<compile_context>
chip_gen: v6e
topology: v6e:2x2x1
jax: 0.10.0
libtpu: 0.0.40
codegen_flags: <defaults>
</compile_context>

<pallas_src>
import functools

import jax
import jax.numpy as jnp
from jax.experimental import pallas as pl
from jax.experimental.pallas import tpu as pltpu


def _round_up(x, m):
    return ((x + m - 1) // m) * m


def _policy_kernel(x_ref, w1_ref, b1_ref, w2_ref, b2_ref, w3_ref, b3_ref,
                   w4_ref, b4_ref, out_ref):
    # x / W* are bf16 on the MXU; accumulation and all elementwise math in f32.
    x = x_ref[...]

    h = jnp.dot(x, w1_ref[...], preferred_element_type=jnp.float32) + b1_ref[...]
    h = jnp.maximum(h, 0.0).astype(jnp.bfloat16)

    h = jnp.dot(h, w2_ref[...], preferred_element_type=jnp.float32) + b2_ref[...]
    h = jnp.maximum(h, 0.0).astype(jnp.bfloat16)

    h = jnp.dot(h, w3_ref[...], preferred_element_type=jnp.float32) + b3_ref[...]
    h = jnp.maximum(h, 0.0).astype(jnp.bfloat16)

    # b4's padded lanes hold -1e30 -> padded lanes contribute exactly 0 to softmax.
    logits = jnp.dot(h, w4_ref[...], preferred_element_type=jnp.float32) + b4_ref[...]

    m = jnp.max(logits, axis=-1, keepdims=True)
    e = jnp.exp(logits - m)
    denom = jnp.sum(e, axis=-1, keepdims=True)
    out_ref[...] = (e * pl.reciprocal(denom, approx=True)).astype(out_ref.dtype)


@functools.partial(jax.jit, static_argnames=("block_b",))
def policy_forward(x, params, *, block_b=128):
    """x: (B, in_dim) float32. params: W1..W4 (in,out) and b1..b4 shaped (1, out)."""
    assert block_b % 8 == 0
    B, in_dim = x.shape
    hidden = params["W1"].shape[1]
    n = params["W4"].shape[1]

    # ---- batch tiling: pad B to a multiple of the batch tile ----------------
    bb = min(block_b, _round_up(B, 8))
    B_pad = _round_up(B, bb)
    if B_pad != B:
        x = jnp.pad(x, ((0, B_pad - B), (0, 0)))

    # ---- lane-dense final layer: pad n -> 128 lanes -------------------------
    n_pad = max(128, _round_up(n, 128))
    w4 = jnp.pad(params["W4"], ((0, 0), (0, n_pad - n)))
    b4 = jnp.pad(params["b4"], ((0, 0), (0, n_pad - n)),
                 constant_values=-1e30)  # padded lanes softmax to exactly 0

    # ---- bf16 MXU operands (f32 accumulation in-kernel) ---------------------
    x_bf16 = x.astype(jnp.bfloat16)
    w1 = params["W1"].astype(jnp.bfloat16)
    w2 = params["W2"].astype(jnp.bfloat16)
    w3 = params["W3"].astype(jnp.bfloat16)
    w4 = w4.astype(jnp.bfloat16)
    b1, b2, b3 = params["b1"], params["b2"], params["b3"]  # biases stay f32

    rep2 = lambda i: (0, 0)  # replicated (grid-invariant) weight / bias tiles
    grid = (B_pad // bb,)

    in_specs = [
        pl.BlockSpec((bb, in_dim), lambda i: (i, 0)),   # x tile
        pl.BlockSpec((in_dim, hidden), rep2),           # W1
        pl.BlockSpec((1, hidden), rep2),                # b1
        pl.BlockSpec((hidden, hidden), rep2),           # W2
        pl.BlockSpec((1, hidden), rep2),                # b2
        pl.BlockSpec((hidden, hidden), rep2),           # W3
        pl.BlockSpec((1, hidden), rep2),                # b3
        pl.BlockSpec((hidden, n_pad), rep2),            # W4 (lane-padded)
        pl.BlockSpec((1, n_pad), rep2),                 # b4 (lane-padded)
    ]
    out_specs = pl.BlockSpec((bb, n_pad), lambda i: (i, 0))

    flops = 2 * B_pad * (in_dim * hidden + 2 * hidden * hidden + hidden * n_pad)
    weight_bytes = 2 * (in_dim * hidden + 2 * hidden * hidden + hidden * n_pad)
    bytes_accessed = weight_bytes + B_pad * in_dim * 2 + B_pad * n_pad * 4

    y_pad = pl.pallas_call(
        _policy_kernel,
        out_shape=jax.ShapeDtypeStruct((B_pad, n_pad), jnp.float32),
        grid_spec=pltpu.PrefetchScalarGridSpec(
            num_scalar_prefetch=0,
            grid=grid,
            in_specs=in_specs,
            out_specs=out_specs,
        ),
        compiler_params=pltpu.CompilerParams(
            dimension_semantics=("parallel",)),
        cost_estimate=pl.CostEstimate(
            flops=flops,
            transcendentals=B_pad * n_pad,
            bytes_accessed=bytes_accessed),
    )(x_bf16, w1, b1, w2, b2, w3, b3, w4, b4)

    # strip batch padding and the lane padding of the action dim
    return y_pad[:B, :n]


def init_params(key, in_dim=256, hidden=256, n=4):
    """Deterministic init mimicking torch.nn.Linear default U[-1/sqrt(fan_in), 1/sqrt(fan_in)]."""
    def linear(k, fan_in, fan_out):
        kw, kb = jax.random.split(k)
        bound = 1.0 / jnp.sqrt(float(fan_in))
        W = jax.random.uniform(kw, (fan_in, fan_out), jnp.float32, -bound, bound)
        b = jax.random.uniform(kb, (1, fan_out), jnp.float32, -bound, bound)
        return W, b

    k1, k2, k3, k4 = jax.random.split(key, 4)
    W1, b1 = linear(k1, in_dim, hidden)
    W2, b2 = linear(k2, hidden, hidden)
    W3, b3 = linear(k3, hidden, hidden)
    W4, b4 = linear(k4, hidden, n)
    return dict(W1=W1, b1=b1, W2=W2, b2=b2, W3=W3, b3=b3, W4=W4, b4=b4)


def reference_forward(x, p):
    h = jax.nn.relu(x @ p["W1"] + p["b1"])
    h = jax.nn.relu(h @ p["W2"] + p["b2"])
    h = jax.nn.relu(h @ p["W3"] + p["b3"])
    return jax.nn.softmax(h @ p["W4"] + p["b4"], axis=-1)


if __name__ == "__main__":
    key = jax.random.PRNGKey(0)
    kx, kp = jax.random.split(key)

    B, IN_DIM, HIDDEN, N_ACTIONS = 256, 256, 256, 4  # scale_up_ratio=1
    x = jax.random.normal(kx, (B, IN_DIM), jnp.float32)
    params = init_params(kp, IN_DIM, HIDDEN, N_ACTIONS)

    # block_b=128 -> grid of 2 parallel steps (both TCs busy on v7x).
    y = policy_forward(x, params, block_b=128)
    y = jax.block_until_ready(y)

    y_ref = reference_forward(x, params)
    assert y.shape == (B, N_ACTIONS)
    # bf16 matmul operands + approx reciprocal -> loosened tolerances.
    assert jnp.allclose(jnp.sum(y, axis=-1), 1.0, atol=1e-2)
    assert jnp.allclose(y, y_ref, atol=5e-2, rtol=5e-2)

    # Ragged-batch path: B not a multiple of the tile (padded internally).
    x_small = jax.random.normal(kx, (10, IN_DIM), jnp.float32)
    y_small = jax.block_until_ready(policy_forward(x_small, params, block_b=128))
    assert y_small.shape == (10, N_ACTIONS)
    assert jnp.allclose(jnp.sum(y_small, axis=-1), 1.0, atol=1e-2)
    assert jnp.allclose(y_small, reference_forward(x_small, params),
                        atol=5e-2, rtol=5e-2)

    # TODO(synk): sample_action / evaluate_actions (Categorical sampling, entropy,
    # log-prob) are host-side distribution utilities, not part of forward(); left out.
    print("KERNEL_OK")
</pallas_src>

<mosaic_0001>
module attributes {stable_mosaic.version = 11 : i64} {
  func.func @_policy_kernel(%arg0: i32, %arg1: memref<128x256xbf16, #tpu.memory_space<vmem>>, %arg2: memref<256x256xbf16, #tpu.memory_space<vmem>>, %arg3: memref<1x256xf32, #tpu.memory_space<vmem>>, %arg4: memref<256x256xbf16, #tpu.memory_space<vmem>>, %arg5: memref<1x256xf32, #tpu.memory_space<vmem>>, %arg6: memref<256x256xbf16, #tpu.memory_space<vmem>>, %arg7: memref<1x256xf32, #tpu.memory_space<vmem>>, %arg8: memref<256x128xbf16, #tpu.memory_space<vmem>>, %arg9: memref<1x128xf32, #tpu.memory_space<vmem>>, %arg10: memref<128x128xf32, #tpu.memory_space<vmem>>) attributes {dimension_semantics = [#tpu.dimension_semantics<parallel>], iteration_bounds = array<i64: 2>, scalar_prefetch = 0 : i64, scratch_operands = 0 : i64, tpu.core_type = #tpu.core_type<tc>, window_params = [{transform_indices = @transform_0, window_bounds = array<i64: 128, 256>}, {pipeline_mode = #tpu.pipeline_mode<synchronous>, transform_indices = @transform_1, window_bounds = array<i64: 256, 256>}, {pipeline_mode = #tpu.pipeline_mode<synchronous>, transform_indices = @transform_2, window_bounds = array<i64: 1, 256>}, {pipeline_mode = #tpu.pipeline_mode<synchronous>, transform_indices = @transform_3, window_bounds = array<i64: 256, 256>}, {pipeline_mode = #tpu.pipeline_mode<synchronous>, transform_indices = @transform_4, window_bounds = array<i64: 1, 256>}, {pipeline_mode = #tpu.pipeline_mode<synchronous>, transform_indices = @transform_5, window_bounds = array<i64: 256, 256>}, {pipeline_mode = #tpu.pipeline_mode<synchronous>, transform_indices = @transform_6, window_bounds = array<i64: 1, 256>}, {pipeline_mode = #tpu.pipeline_mode<synchronous>, transform_indices = @transform_7, window_bounds = array<i64: 256, 128>}, {pipeline_mode = #tpu.pipeline_mode<synchronous>, transform_indices = @transform_8, window_bounds = array<i64: 1, 128>}, {transform_indices = @transform_9, window_bounds = array<i64: 128, 128>}]} {
    %c0 = arith.constant 0 : index
    %c0_0 = arith.constant 0 : index
    %0 = vector.load %arg1[%c0, %c0_0] : memref<128x256xbf16, #tpu.memory_space<vmem>>, vector<128x256xbf16>
    %c0_1 = arith.constant 0 : index
    %c0_2 = arith.constant 0 : index
    %1 = vector.load %arg2[%c0_1, %c0_2] : memref<256x256xbf16, #tpu.memory_space<vmem>>, vector<256x256xbf16>
    %cst = arith.constant dense<0.000000e+00> : vector<128x256xf32>
    %2 = tpu.matmul %0, %1, %cst {dimension_numbers = #tpu.dot_dimension_numbers<[1], [0], [0], [1], [0, 0, 1, 1], [], []>} : vector<128x256xbf16>, vector<256x256xbf16>, vector<128x256xf32> -> vector<128x256xf32>
    %c0_3 = arith.constant 0 : index
    %c0_4 = arith.constant 0 : index
    %3 = vector.load %arg3[%c0_3, %c0_4] : memref<1x256xf32, #tpu.memory_space<vmem>>, vector<1x256xf32>
    %4 = vector.broadcast %3 : vector<1x256xf32> to vector<128x256xf32>
    %5 = arith.addf %2, %4 : vector<128x256xf32>
    %cst_5 = arith.constant 0.000000e+00 : f32
    %6 = vector.broadcast %cst_5 : f32 to vector<128x256xf32>
    %7 = arith.maximumf %5, %6 : vector<128x256xf32>
    %8 = arith.truncf %7 : vector<128x256xf32> to vector<128x256xbf16>
    %c0_6 = arith.constant 0 : index
    %c0_7 = arith.constant 0 : index
    %9 = vector.load %arg4[%c0_6, %c0_7] : memref<256x256xbf16, #tpu.memory_space<vmem>>, vector<256x256xbf16>
    %cst_8 = arith.constant dense<0.000000e+00> : vector<128x256xf32>
    %10 = tpu.matmul %8, %9, %cst_8 {dimension_numbers = #tpu.dot_dimension_numbers<[1], [0], [0], [1], [0, 0, 1, 1], [], []>} : vector<128x256xbf16>, vector<256x256xbf16>, vector<128x256xf32> -> vector<128x256xf32>
    %c0_9 = arith.constant 0 : index
    %c0_10 = arith.constant 0 : index
    %11 = vector.load %arg5[%c0_9, %c0_10] : memref<1x256xf32, #tpu.memory_space<vmem>>, vector<1x256xf32>
    %12 = vector.broadcast %11 : vector<1x256xf32> to vector<128x256xf32>
    %13 = arith.addf %10, %12 : vector<128x256xf32>
    %cst_11 = arith.constant 0.000000e+00 : f32
    %14 = vector.broadcast %cst_11 : f32 to vector<128x256xf32>
    %15 = arith.maximumf %13, %14 : vector<128x256xf32>
    %16 = arith.truncf %15 : vector<128x256xf32> to vector<128x256xbf16>
    %c0_12 = arith.constant 0 : index
    %c0_13 = arith.constant 0 : index
    %17 = vector.load %arg6[%c0_12, %c0_13] : memref<256x256xbf16, #tpu.memory_space<vmem>>, vector<256x256xbf16>
    %cst_14 = arith.constant dense<0.000000e+00> : vector<128x256xf32>
    %18 = tpu.matmul %16, %17, %cst_14 {dimension_numbers = #tpu.dot_dimension_numbers<[1], [0], [0], [1], [0, 0, 1, 1], [], []>} : vector<128x256xbf16>, vector<256x256xbf16>, vector<128x256xf32> -> vector<128x256xf32>
    %c0_15 = arith.constant 0 : index
    %c0_16 = arith.constant 0 : index
    %19 = vector.load %arg7[%c0_15, %c0_16] : memref<1x256xf32, #tpu.memory_space<vmem>>, vector<1x256xf32>
    %20 = vector.broadcast %19 : vector<1x256xf32> to vector<128x256xf32>
    %21 = arith.addf %18, %20 : vector<128x256xf32>
    %cst_17 = arith.constant 0.000000e+00 : f32
    %22 = vector.broadcast %cst_17 : f32 to vector<128x256xf32>
    %23 = arith.maximumf %21, %22 : vector<128x256xf32>
    %24 = arith.truncf %23 : vector<128x256xf32> to vector<128x256xbf16>
    %c0_18 = arith.constant 0 : index
    %c0_19 = arith.constant 0 : index
    %25 = vector.load %arg8[%c0_18, %c0_19] : memref<256x128xbf16, #tpu.memory_space<vmem>>, vector<256x128xbf16>
    %cst_20 = arith.constant dense<0.000000e+00> : vector<128x128xf32>
    %26 = tpu.matmul %24, %25, %cst_20 {dimension_numbers = #tpu.dot_dimension_numbers<[1], [0], [0], [1], [0, 0, 1, 1], [], []>} : vector<128x256xbf16>, vector<256x128xbf16>, vector<128x128xf32> -> vector<128x128xf32>
    %c0_21 = arith.constant 0 : index
    %c0_22 = arith.constant 0 : index
    %27 = vector.load %arg9[%c0_21, %c0_22] : memref<1x128xf32, #tpu.memory_space<vmem>>, vector<1x128xf32>
    %28 = vector.broadcast %27 : vector<1x128xf32> to vector<128x128xf32>
    %29 = arith.addf %26, %28 : vector<128x128xf32>
    %cst_23 = arith.constant dense<0xFF800000> : vector<128xf32>
    %30 = vector.multi_reduction <maximumf>, %29, %cst_23 [1] : vector<128x128xf32> to vector<128xf32>
    %31 = vector.shape_cast %30 : vector<128xf32> to vector<128x1xf32>
    %32 = vector.broadcast %31 : vector<128x1xf32> to vector<128x128xf32>
    %33 = arith.subf %29, %32 : vector<128x128xf32>
    %34 = math.exp %33 : vector<128x128xf32>
    %cst_24 = arith.constant dense<0.000000e+00> : vector<128xf32>
    %35 = vector.multi_reduction <add>, %34, %cst_24 [1] : vector<128x128xf32> to vector<128xf32>
    %36 = vector.shape_cast %35 : vector<128xf32> to vector<128x1xf32>
    %37 = tpu.reciprocal %36 {approx = true} : vector<128x1xf32> -> vector<128x1xf32>
    %38 = vector.broadcast %37 : vector<128x1xf32> to vector<128x128xf32>
    %39 = arith.mulf %34, %38 : vector<128x128xf32>
    %c0_25 = arith.constant 0 : index
    %c0_26 = arith.constant 0 : index
    %40 = vector.load %arg10[%c0_25, %c0_26] : memref<128x128xf32, #tpu.memory_space<vmem>>, vector<128x128xf32>
    tpu.vector_store %arg10[%c0_25, %c0_26], %39 {strides = array<i32>} : memref<128x128xf32, #tpu.memory_space<vmem>>, vector<128x128xf32>,
    return
  }
  func.func @transform_0(%arg0: i32) -> (i32, i32) {
    %c0_i32 = arith.constant 0 : i32
    %c0_i32_0 = arith.constant 0 : i32
    return %arg0, %c0_i32 : i32, i32
  }
  func.func @transform_1(%arg0: i32) -> (i32, i32) {
    %c0_i32 = arith.constant 0 : i32
    %c0_i32_0 = arith.constant 0 : i32
    %c0_i32_1 = arith.constant 0 : i32
    return %c0_i32, %c0_i32_0 : i32, i32
  }
  func.func @transform_2(%arg0: i32) -> (i32, i32) {
    %c0_i32 = arith.constant 0 : i32
    %c0_i32_0 = arith.constant 0 : i32
    %c0_i32_1 = arith.constant 0 : i32
    return %c0_i32, %c0_i32_0 : i32, i32
  }
  func.func @transform_3(%arg0: i32) -> (i32, i32) {
    %c0_i32 = arith.constant 0 : i32
    %c0_i32_0 = arith.constant 0 : i32
    %c0_i32_1 = arith.constant 0 : i32
    return %c0_i32, %c0_i32_0 : i32, i32
  }
  func.func @transform_4(%arg0: i32) -> (i32, i32) {
    %c0_i32 = arith.constant 0 : i32
    %c0_i32_0 = arith.constant 0 : i32
    %c0_i32_1 = arith.constant 0 : i32
    return %c0_i32, %c0_i32_0 : i32, i32
  }
  func.func @transform_5(%arg0: i32) -> (i32, i32) {
    %c0_i32 = arith.constant 0 : i32
    %c0_i32_0 = arith.constant 0 : i32
    %c0_i32_1 = arith.constant 0 : i32
    return %c0_i32, %c0_i32_0 : i32, i32
  }
  func.func @transform_6(%arg0: i32) -> (i32, i32) {
    %c0_i32 = arith.constant 0 : i32
    %c0_i32_0 = arith.constant 0 : i32
    %c0_i32_1 = arith.constant 0 : i32
    return %c0_i32, %c0_i32_0 : i32, i32
  }
  func.func @transform_7(%arg0: i32) -> (i32, i32) {
    %c0_i32 = arith.constant 0 : i32
    %c0_i32_0 = arith.constant 0 : i32
    %c0_i32_1 = arith.constant 0 : i32
    return %c0_i32, %c0_i32_0 : i32, i32
  }
  func.func @transform_8(%arg0: i32) -> (i32, i32) {
    %c0_i32 = arith.constant 0 : i32
    %c0_i32_0 = arith.constant 0 : i32
    %c0_i32_1 = arith.constant 0 : i32
    return %c0_i32, %c0_i32_0 : i32, i32
  }
  func.func @transform_9(%arg0: i32) -> (i32, i32) {
    %c0_i32 = arith.constant 0 : i32
    %c0_i32_0 = arith.constant 0 : i32
    return %arg0, %c0_i32 : i32, i32
  }
}

</mosaic_0001>

<llo_original>
// kernel: policy_forward.1
$region0: #{policy_forward.1}
  #allocation0 [shape = 'u32[]', space=smem, size = 0x4, offset = 0x4, fixed_abs, tag = 'smem constant byte address 0x4 - core index']
  #allocation1 [shape = 'u32[144,128]{1,0:T(1,128)}', space=vmem, size = 0x12000, scoped, tag = 'internal scratch']
  %s0 = inlined_call_operand.vmem [shape: bf16[256,256], index: 0, kind: input, shape index: {}]
  %s1 = inlined_call_operand.vmem [shape: bf16[256,256], index: 1, kind: input, shape index: {}]
  %s2 = inlined_call_operand.vmem [shape: f32[1,256], index: 2, kind: input, shape index: {}]
  %s3 = inlined_call_operand.vmem [shape: bf16[256,256], index: 3, kind: input, shape index: {}]
  %s4 = inlined_call_operand.vmem [shape: f32[1,256], index: 4, kind: input, shape index: {}]
  %s5 = inlined_call_operand.vmem [shape: bf16[256,256], index: 5, kind: input, shape index: {}]
  %s6 = inlined_call_operand.vmem [shape: f32[1,256], index: 6, kind: input, shape index: {}]
  %s7 = inlined_call_operand.vmem [shape: bf16[256,128], index: 7, kind: input, shape index: {}]
  %s8 = inlined_call_operand.vmem [shape: f32[1,128], index: 8, kind: input, shape index: {}]
  %s9 = inlined_call_operand.vmem [shape: f32[256,128], index: 9, kind: output, shape index: {}]
  %s10 = sld [smem:[#allocation0]]
  $region69: #{policy_forward.1} parent=0
    _
  %s12 = ssub.s32 1, %s10
  %s13 = scalar_select 0, %s12, %s10
  loop: start=0, step=1, limit=4
  $region2: #{policy_forward.1} parent=0 // loop_pre_header
    _
  $region3: #{policy_forward.1} parent=0 // loop_header
    %s15 = sphi 0, %s19
    %p16 = scmp.ge.s32.totalorder %s15, 4
    %s25 = sphi 0, %s27
    %s28 = sphi 0, %s25
    %s29 = sphi 0, %s28
    %s45 = sphi 0, %s29
    %s49 = sphi 0, %s49
    %s51 = sphi 0, %s49
    %s52 = sphi 0, %s51
    %s66 = sphi 0, %s52
    %s70 = sphi 0, %s70
    %s72 = sphi 0, %s70
    %s73 = sphi 0, %s72
    %s87 = sphi 0, %s73
    %s91 = sphi 0, %s91
    %s93 = sphi 0, %s91
    %s94 = sphi 0, %s93
    %s108 = sphi 0, %s94
    %s112 = sphi 0, %s112
    %s114 = sphi 0, %s112
    %s115 = sphi 0, %s114
    %s129 = sphi 0, %s115
    %s133 = sphi 0, %s133
    %s135 = sphi 0, %s133
    %s136 = sphi 0, %s135
    %s150 = sphi 0, %s136
    %s154 = sphi 0, %s154
    %s156 = sphi 0, %s154
    %s157 = sphi 0, %s156
    %s171 = sphi 0, %s157
    %s175 = sphi 0, %s175
    %s177 = sphi 0, %s175
    %s178 = sphi 0, %s177
    %s192 = sphi 0, %s178
    %s196 = sphi 0, %s196
    %s198 = sphi 0, %s196
    %s199 = sphi 0, %s198
    %s213 = sphi 0, %s199
    %s219 = sphi 0, %s221
    %s222 = sphi 0, %s219
    %s223 = sphi 0, %s222
    %s239 = sphi 0, %s223
  $region4: #{policy_forward.1} parent=0 // loop_header_branch
    %18 = sbr.rel (%p16) target = $region8
  $region5: #{policy_forward.1} parent=0 // loop_body
    %s20 = ssub.s32 %s15, 1
    %s21 = ssub.s32 %s15, 2
    %s22 = sadd.s32 %s15, 1
    %s23 = ssub.s32 %s15, %s22
    %p24 = scmp.eq.s32.totalorder %s23, 0
    %s26 = sadd.s32 %s25, 1
    %s27 = scalar_select %p24, %s25, %s26
    %p30 = pneg %p24
    %p31 = scmp.eq.s32.totalorder %s15, 1
    %p32 = por %p30, %p31
    %p33 = scmp.ne.s32.totalorder %s25, %s28
    %p34 = scmp.eq.s32.totalorder %s15, 0
    %p35 = por %p33, %p34
    %p36 = scmp.ne.s32.totalorder %s25, %s28
    %p37 = scmp.eq.s32.totalorder %s20, 1
    %p38 = por %p36, %p37
    %p39 = scmp.ne.s32.totalorder %s28, %s29
    %p40 = scmp.eq.s32.totalorder %s20, 0
    %p41 = por %p39, %p40
    %p42 = scmp.ne.s32.totalorder %s28, %s29
    %p43 = scmp.eq.s32.totalorder %s21, 1
    %p44 = por %p42, %p43
    %p46 = scmp.ne.s32.totalorder %s29, %s45
    %p47 = scmp.eq.s32.totalorder %s21, 0
    %p48 = por %p46, %p47
    %s50 = sadd.s32 %s49, 1
    %p53 = scmp.eq.s32.totalorder %s15, 1
    %p54 = scmp.ne.s32.totalorder %s49, %s51
    %p55 = scmp.eq.s32.totalorder %s15, 0
    %p56 = por %p54, %p55
    %p57 = scmp.ne.s32.totalorder %s49, %s51
    %p58 = scmp.eq.s32.totalorder %s20, 1
    %p59 = por %p57, %p58
    %p60 = scmp.ne.s32.totalorder %s51, %s52
    %p61 = scmp.eq.s32.totalorder %s20, 0
    %p62 = por %p60, %p61
    %p63 = scmp.ne.s32.totalorder %s51, %s52
    %p64 = scmp.eq.s32.totalorder %s21, 1
    %p65 = por %p63, %p64
    %p67 = scmp.ne.s32.totalorder %s52, %s66
    %p68 = scmp.eq.s32.totalorder %s21, 0
    %p69 = por %p67, %p68
    %s71 = sadd.s32 %s70, 1
    %p74 = scmp.eq.s32.totalorder %s15, 1
    %p75 = scmp.ne.s32.totalorder %s70, %s72
    %p76 = scmp.eq.s32.totalorder %s15, 0
    %p77 = por %p75, %p76
    %p78 = scmp.ne.s32.totalorder %s70, %s72
    %p79 = scmp.eq.s32.totalorder %s20, 1
    %p80 = por %p78, %p79
    %p81 = scmp.ne.s32.totalorder %s72, %s73
    %p82 = scmp.eq.s32.totalorder %s20, 0
    %p83 = por %p81, %p82
    %p84 = scmp.ne.s32.totalorder %s72, %s73
    %p85 = scmp.eq.s32.totalorder %s21, 1
    %p86 = por %p84, %p85
    %p88 = scmp.ne.s32.totalorder %s73, %s87
    %p89 = scmp.eq.s32.totalorder %s21, 0
    %p90 = por %p88, %p89
    %s92 = sadd.s32 %s91, 1
    %p95 = scmp.eq.s32.totalorder %s15, 1
    %p96 = scmp.ne.s32.totalorder %s91, %s93
    %p97 = scmp.eq.s32.totalorder %s15, 0
    %p98 = por %p96, %p97
    %p99 = scmp.ne.s32.totalorder %s91, %s93
    %p100 = scmp.eq.s32.totalorder %s20, 1
    %p101 = por %p99, %p100
    %p102 = scmp.ne.s32.totalorder %s93, %s94
    %p103 = scmp.eq.s32.totalorder %s20, 0
    %p104 = por %p102, %p103
    %p105 = scmp.ne.s32.totalorder %s93, %s94
    %p106 = scmp.eq.s32.totalorder %s21, 1
    %p107 = por %p105, %p106
    %p109 = scmp.ne.s32.totalorder %s94, %s108
    %p110 = scmp.eq.s32.totalorder %s21, 0
    %p111 = por %p109, %p110
    %s113 = sadd.s32 %s112, 1
    %p116 = scmp.eq.s32.totalorder %s15, 1
    %p117 = scmp.ne.s32.totalorder %s112, %s114
    %p118 = scmp.eq.s32.totalorder %s15, 0
    %p119 = por %p117, %p118
    %p120 = scmp.ne.s32.totalorder %s112, %s114
    %p121 = scmp.eq.s32.totalorder %s20, 1
    %p122 = por %p120, %p121
    %p123 = scmp.ne.s32.totalorder %s114, %s115
    %p124 = scmp.eq.s32.totalorder %s20, 0
    %p125 = por %p123, %p124
    %p126 = scmp.ne.s32.totalorder %s114, %s115
    %p127 = scmp.eq.s32.totalorder %s21, 1
    %p128 = por %p126, %p127
    %p130 = scmp.ne.s32.totalorder %s115, %s129
    %p131 = scmp.eq.s32.totalorder %s21, 0
    %p132 = por %p130, %p131
    %s134 = sadd.s32 %s133, 1
    %p137 = scmp.eq.s32.totalorder %s15, 1
    %p138 = scmp.ne.s32.totalorder %s133, %s135
    %p139 = scmp.eq.s32.totalorder %s15, 0
    %p140 = por %p138, %p139
    %p141 = scmp.ne.s32.totalorder %s133, %s135
    %p142 = scmp.eq.s32.totalorder %s20, 1
    %p143 = por %p141, %p142
    %p144 = scmp.ne.s32.totalorder %s135, %s136
    %p145 = scmp.eq.s32.totalorder %s20, 0
    %p146 = por %p144, %p145
    %p147 = scmp.ne.s32.totalorder %s135, %s136
    %p148 = scmp.eq.s32.totalorder %s21, 1
    %p149 = por %p147, %p148
    %p151 = scmp.ne.s32.totalorder %s136, %s150
    %p152 = scmp.eq.s32.totalorder %s21, 0
    %p153 = por %p151, %p152
    %s155 = sadd.s32 %s154, 1
    %p158 = scmp.eq.s32.totalorder %s15, 1
    %p159 = scmp.ne.s32.totalorder %s154, %s156
    %p160 = scmp.eq.s32.totalorder %s15, 0
    %p161 = por %p159, %p160
    %p162 = scmp.ne.s32.totalorder %s154, %s156
    %p163 = scmp.eq.s32.totalorder %s20, 1
    %p164 = por %p162, %p163
    %p165 = scmp.ne.s32.totalorder %s156, %s157
    %p166 = scmp.eq.s32.totalorder %s20, 0
    %p167 = por %p165, %p166
    %p168 = scmp.ne.s32.totalorder %s156, %s157
    %p169 = scmp.eq.s32.totalorder %s21, 1
    %p170 = por %p168, %p169
    %p172 = scmp.ne.s32.totalorder %s157, %s171
    %p173 = scmp.eq.s32.totalorder %s21, 0
    %p174 = por %p172, %p173
    %s176 = sadd.s32 %s175, 1
    %p179 = scmp.eq.s32.totalorder %s15, 1
    %p180 = scmp.ne.s32.totalorder %s175, %s177
    %p181 = scmp.eq.s32.totalorder %s15, 0
    %p182 = por %p180, %p181
    %p183 = scmp.ne.s32.totalorder %s175, %s177
    %p184 = scmp.eq.s32.totalorder %s20, 1
    %p185 = por %p183, %p184
    %p186 = scmp.ne.s32.totalorder %s177, %s178
    %p187 = scmp.eq.s32.totalorder %s20, 0
    %p188 = por %p186, %p187
    %p189 = scmp.ne.s32.totalorder %s177, %s178
    %p190 = scmp.eq.s32.totalorder %s21, 1
    %p191 = por %p189, %p190
    %p193 = scmp.ne.s32.totalorder %s178, %s192
    %p194 = scmp.eq.s32.totalorder %s21, 0
    %p195 = por %p193, %p194
    %s197 = sadd.s32 %s196, 1
    %p200 = scmp.eq.s32.totalorder %s15, 1
    %p201 = scmp.ne.s32.totalorder %s196, %s198
    %p202 = scmp.eq.s32.totalorder %s15, 0
    %p203 = por %p201, %p202
    %p204 = scmp.ne.s32.totalorder %s196, %s198
    %p205 = scmp.eq.s32.totalorder %s20, 1
    %p206 = por %p204, %p205
    %p207 = scmp.ne.s32.totalorder %s198, %s199
    %p208 = scmp.eq.s32.totalorder %s20, 0
    %p209 = por %p207, %p208
    %p210 = scmp.ne.s32.totalorder %s198, %s199
    %p211 = scmp.eq.s32.totalorder %s21, 1
    %p212 = por %p210, %p211
    %p214 = scmp.ne.s32.totalorder %s199, %s213
    %p215 = scmp.eq.s32.totalorder %s21, 0
    %p216 = por %p214, %p215
    %s217 = ssub.s32 %s15, %s22
    %p218 = scmp.eq.s32.totalorder %s217, 0
    %s220 = sadd.s32 %s219, 1
    %s221 = scalar_select %p218, %s219, %s220
    %p224 = pneg %p218
    %p225 = scmp.eq.s32.totalorder %s15, 1
    %p226 = por %p224, %p225
    %p227 = scmp.ne.s32.totalorder %s219, %s222
    %p228 = scmp.eq.s32.totalorder %s15, 0
    %p229 = por %p227, %p228
    %p230 = scmp.ne.s32.totalorder %s219, %s222
    %p231 = scmp.eq.s32.totalorder %s20, 1
    %p232 = por %p230, %p231
    %p233 = scmp.ne.s32.totalorder %s222, %s223
    %p234 = scmp.eq.s32.totalorder %s20, 0
    %p235 = por %p233, %p234
    %p236 = scmp.ne.s32.totalorder %s222, %s223
    %p237 = scmp.eq.s32.totalorder %s21, 1
    %p238 = por %p236, %p237
    %p240 = scmp.ne.s32.totalorder %s223, %s239
    %p241 = scmp.eq.s32.totalorder %s21, 0
    %p242 = por %p240, %p241
    %p243 = scmp.le.s32.totalorder 1, %s15
    %p244 = scmp.lt.s32.totalorder %s15, 3
    %p245 = pnand %p243, %p244
    %p246 = pneg %p245
    // Predicated region
    $region9: #{policy_forward.1} parent=5 // pred_check
      _
    $region10: #{policy_forward.1} parent=5 // pred_check_branch
      %248 = sbr.rel (%p245) target = $region12
    $region11: #{policy_forward.1} parent=5 // pred_region
      %s249 = ssub.s32 %s15, 1
      // Predicated region
      $region13: #{policy_forward.1} parent=11 // pred_check
        %p250 = pneg %p62
      $region14: #{policy_forward.1} parent=11 // pred_check_branch
        %252 = sbr.rel (%p250) target = $region16
      $region15: #{policy_forward.1} parent=11 // pred_region
        _
      $region16: #{policy_forward.1} parent=11 // pred_fallthru
        _
      // Predicated region
      $region17: #{policy_forward.1} parent=11 // pred_check
        %p253 = pneg %p83
      $region18: #{policy_forward.1} parent=11 // pred_check_branch
        %255 = sbr.rel (%p253) target = $region20
      $region19: #{policy_forward.1} parent=11 // pred_region
        _
      $region20: #{policy_forward.1} parent=11 // pred_fallthru
        _
      // Predicated region
      $region21: #{policy_forward.1} parent=11 // pred_check
        %p256 = pneg %p104
      $region22: #{policy_forward.1} parent=11 // pred_check_branch
        %258 = sbr.rel (%p256) target = $region24
      $region23: #{policy_forward.1} parent=11 // pred_region
        _
      $region24: #{policy_forward.1} parent=11 // pred_fallthru
        _
      // Predicated region
      $region25: #{policy_forward.1} parent=11 // pred_check
        %p259 = pneg %p125
      $region26: #{policy_forward.1} parent=11 // pred_check_branch
        %261 = sbr.rel (%p259) target = $region28
      $region27: #{policy_forward.1} parent=11 // pred_region
        _
      $region28: #{policy_forward.1} parent=11 // pred_fallthru
        _
      // Predicated region
      $region29: #{policy_forward.1} parent=11 // pred_check
        %p262 = pneg %p146
      $region30: #{policy_forward.1} parent=11 // pred_check_branch
        %264 = sbr.rel (%p262) target = $region32
      $region31: #{policy_forward.1} parent=11 // pred_region
        _
      $region32: #{policy_forward.1} parent=11 // pred_fallthru
        _
      // Predicated region
      $region33: #{policy_forward.1} parent=11 // pred_check
        %p265 = pneg %p167
      $region34: #{policy_forward.1} parent=11 // pred_check_branch
        %267 = sbr.rel (%p265) target = $region36
      $region35: #{policy_forward.1} parent=11 // pred_region
        _
      $region36: #{policy_forward.1} parent=11 // pred_fallthru
        _
      // Predicated region
      $region37: #{policy_forward.1} parent=11 // pred_check
        %p268 = pneg %p188
      $region38: #{policy_forward.1} parent=11 // pred_check_branch
        %270 = sbr.rel (%p268) target = $region40
      $region39: #{policy_forward.1} parent=11 // pred_region
        _
      $region40: #{policy_forward.1} parent=11 // pred_fallthru
        _
      // Predicated region
      $region41: #{policy_forward.1} parent=11 // pred_check
        %p271 = pneg %p209
      $region42: #{policy_forward.1} parent=11 // pred_check_branch
        %273 = sbr.rel (%p271) target = $region44
      $region43: #{policy_forward.1} parent=11 // pred_region
        _
      $region44: #{policy_forward.1} parent=11 // pred_fallthru
        _
    $region12: #{policy_forward.1} parent=5 // pred_fallthru
      _
    %p274 = scmp.lt.s32.totalorder %s15, 2
    // Predicated region
    $region45: #{policy_forward.1} parent=5 // pred_check
      %p275 = pneg %p274
    $region46: #{policy_forward.1} parent=5 // pred_check_branch
      %277 = sbr.rel (%p275) target = $region48
    $region47: #{policy_forward.1} parent=5 // pred_region
      // Predicated region
      $region49: #{policy_forward.1} parent=47 // pred_check
        %p278 = pneg %p35
      $region50: #{policy_forward.1} parent=47 // pred_check_branch
        %280 = sbr.rel (%p278) target = $region52
      $region51: #{policy_forward.1} parent=47 // pred_region
        %s281 = smul.u32 16, %s15
        %p282 = scmp.lt.s32.totalorder %s281, 31
        %s283 = scalar_select %p282, %s281, 31
        %s284 = smul.addr %s283, 2
        %s285 = smul.addr %s284, 4
        %s286 = scalar_lea.vmem %s0, %s285
        %s287 = smul.u32 16, %s15
      $region52: #{policy_forward.1} parent=47 // pred_fallthru
        _
    $region48: #{policy_forward.1} parent=5 // pred_fallthru
      _
    %p288 = scmp.le.s32.totalorder 1, %s15
    %p289 = scmp.lt.s32.totalorder %s15, 3
    %p290 = pnand %p288, %p289
    %p291 = pneg %p290
    // Predicated region
    $region53: #{policy_forward.1} parent=5 // pred_check
      _
    $region54: #{policy_forward.1} parent=5 // pred_check_branch
      %293 = sbr.rel (%p290) target = $region56
    $region55: #{policy_forward.1} parent=5 // pred_region
      %s294 = ssub.s32 %s15, 1
      %s295 = smul.u32 16, %s20
      %p296 = scmp.lt.s32.totalorder %s295, 31
      %s297 = scalar_select %p296, %s295, 31
      %s298 = smul.addr %s297, 2
      %s299 = smul.addr %s298, 4
      %s300 = scalar_lea.vmem %s0, %s299
      %p301 = pneg %p41
      %p302 = pneg %p38
      %p303 = pneg %p62
      %p304 = pneg %p59
      %p305 = pneg %p83
      %p306 = pneg %p80
      %p307 = pneg %p104
      %p308 = pneg %p101
      %p309 = pneg %p125
      %p310 = pneg %p122
      %p311 = pneg %p146
      %p312 = pneg %p143
      %p313 = pneg %p167
      %p314 = pneg %p164
      %p315 = pneg %p188
      %p316 = pneg %p185
      %p317 = pneg %p209
      %p318 = pneg %p206
      %p319 = pneg %p235
      %p320 = pneg %p232
      %s321 = smul.u32 16, %s20
      %p322 = scmp.lt.s32.totalorder %s321, 31
      %s323 = scalar_select %p322, %s321, 31
      %s324 = smul.addr %s323, 8
      %s325 = scalar_lea.vmem %s9, %s324
      %s326 = smul.u32 16, %s20
      %p327 = scmp.lt.s32.totalorder %s326, 31
      %s328 = scalar_select %p327, %s326, 31
      %s329 = smul.addr %s328, 2
      %s330 = smul.addr %s329, 4
      %s331 = scalar_lea.vmem %s0, %s330
      %s332 = smul.u32 16, %s20
      %s333 = smul.u32 16, %s20
      %p334 = scmp.lt.s32.totalorder %s333, 31
      %s335 = scalar_select %p334, %s333, 31
      %s336 = smul.addr %s335, 8
      %s337 = scalar_lea.vmem %s9, %s336
      %s338 = smul.u32 16, %s20
      %v340 = vld [vmem:[%s331] sm:$0xff]
      %v341 = vld [vmem:[%s331 + $0x8] sm:$0xff]
      %v342 = vld [vmem:[%s331 + $0x10] sm:$0xff]
      %v343 = vld [vmem:[%s331 + $0x18] sm:$0xff]
      %v344 = vld [vmem:[%s331 + $0x20] sm:$0xff]
      %v345 = vld [vmem:[%s331 + $0x28] sm:$0xff]
      %v346 = vld [vmem:[%s331 + $0x30] sm:$0xff]
      %v347 = vld [vmem:[%s331 + $0x38] sm:$0xff]
      %v348 = vld [vmem:[%s331 + $0x40] sm:$0xff]
      %v349 = vld [vmem:[%s331 + $0x48] sm:$0xff]
      %v350 = vld [vmem:[%s331 + $0x50] sm:$0xff]
      %v351 = vld [vmem:[%s331 + $0x58] sm:$0xff]
      %v352 = vld [vmem:[%s331 + $0x60] sm:$0xff]
      %v353 = vld [vmem:[%s331 + $0x68] sm:$0xff]
      %v354 = vld [vmem:[%s331 + $0x70] sm:$0xff]
      %v355 = vld [vmem:[%s331 + $0x78] sm:$0xff]
      %v356 = vld [vmem:[%s1] sm:$0xff]
      %v357 = vld [vmem:[%s1 + $0x8] sm:$0xff]
      %v358 = vld [vmem:[%s1 + $0x10] sm:$0xff]
      %v359 = vld [vmem:[%s1 + $0x18] sm:$0xff]
      %v360 = vld [vmem:[%s1 + $0x20] sm:$0xff]
      %v361 = vld [vmem:[%s1 + $0x28] sm:$0xff]
      %v362 = vld [vmem:[%s1 + $0x30] sm:$0xff]
      %v363 = vld [vmem:[%s1 + $0x38] sm:$0xff]
      %v364 = vld [vmem:[%s1 + $0x40] sm:$0xff]
      %v365 = vld [vmem:[%s1 + $0x48] sm:$0xff]
      %v366 = vld [vmem:[%s1 + $0x50] sm:$0xff]
      %v367 = vld [vmem:[%s1 + $0x58] sm:$0xff]
      %v368 = vld [vmem:[%s1 + $0x60] sm:$0xff]
      %v369 = vld [vmem:[%s1 + $0x68] sm:$0xff]
      %v370 = vld [vmem:[%s1 + $0x70] sm:$0xff]
      %v371 = vld [vmem:[%s1 + $0x78] sm:$0xff]
      %v372 = vld [vmem:[%s1 + $0x80] sm:$0xff]
      %v373 = vld [vmem:[%s1 + $0x88] sm:$0xff]
      %v374 = vld [vmem:[%s1 + $0x90] sm:$0xff]
      %v375 = vld [vmem:[%s1 + $0x98] sm:$0xff]
      %v376 = vld [vmem:[%s1 + $0xa0] sm:$0xff]
      %v377 = vld [vmem:[%s1 + $0xa8] sm:$0xff]
      %v378 = vld [vmem:[%s1 + $0xb0] sm:$0xff]
      %v379 = vld [vmem:[%s1 + $0xb8] sm:$0xff]
      %v380 = vld [vmem:[%s1 + $0xc0] sm:$0xff]
      %v381 = vld [vmem:[%s1 + $0xc8] sm:$0xff]
      %v382 = vld [vmem:[%s1 + $0xd0] sm:$0xff]
      %v383 = vld [vmem:[%s1 + $0xd8] sm:$0xff]
      %v384 = vld [vmem:[%s1 + $0xe0] sm:$0xff]
      %v385 = vld [vmem:[%s1 + $0xe8] sm:$0xff]
      %v386 = vld [vmem:[%s1 + $0xf0] sm:$0xff]
      %v387 = vld [vmem:[%s1 + $0xf8] sm:$0xff]
      %v388 = vld [vmem:[%s2] sm:$0x3]
      %v390 = vlaneseq
      %v391 = vshrl.u32 %v390, 7
      %v392 = vsub.s32 0, %v391
      %v393 = vrot.slane %v388, %v392
      %v394 = vlaneseq
      %v395 = vshrl.u32 %v394, 7
      %v396 = vsub.s32 1, %v395
      %v397 = vrot.slane %v388, %v396
      %v416 = vunpack.c.l.b16 %v340
      %v417 = vunpack.c.h.b16 %v340
      %v418 = vunpack.c.l.b16 %v341
      %v419 = vunpack.c.h.b16 %v341
      %v420 = vunpack.c.l.b16 %v342
      %v421 = vunpack.c.h.b16 %v342
      %v422 = vunpack.c.l.b16 %v343
      %v423 = vunpack.c.h.b16 %v343
      %v424 = vunpack.c.l.b16 %v344
      %v425 = vunpack.c.h.b16 %v344
      %v426 = vunpack.c.l.b16 %v345
      %v427 = vunpack.c.h.b16 %v345
      %v428 = vunpack.c.l.b16 %v346
      %v429 = vunpack.c.h.b16 %v346
      %v430 = vunpack.c.l.b16 %v347
      %v431 = vunpack.c.h.b16 %v347
      %v432 = vunpack.c.l.b16 %v348
      %v433 = vunpack.c.h.b16 %v348
      %v434 = vunpack.c.l.b16 %v349
      %v435 = vunpack.c.h.b16 %v349
      %v436 = vunpack.c.l.b16 %v350
      %v437 = vunpack.c.h.b16 %v350
      %v438 = vunpack.c.l.b16 %v351
      %v439 = vunpack.c.h.b16 %v351
      %v440 = vunpack.c.l.b16 %v352
      %v441 = vunpack.c.h.b16 %v352
      %v442 = vunpack.c.l.b16 %v353
      %v443 = vunpack.c.h.b16 %v353
      %v444 = vunpack.c.l.b16 %v354
      %v445 = vunpack.c.h.b16 %v354
      %v446 = vunpack.c.l.b16 %v355
      %v447 = vunpack.c.h.b16 %v355
      %v448 = vpack.c.b16 %v418, %v416
      %v449 = vpack.c.b16 %v419, %v417
      %v450 = vpack.c.b16 %v422, %v420
      %v451 = vpack.c.b16 %v423, %v421
      %v452 = vpack.c.b16 %v426, %v424
      %v453 = vpack.c.b16 %v427, %v425
      %v454 = vpack.c.b16 %v430, %v428
      %v455 = vpack.c.b16 %v431, %v429
      %v456 = vpack.c.b16 %v434, %v432
      %v457 = vpack.c.b16 %v435, %v433
      %v458 = vpack.c.b16 %v438, %v436
      %v459 = vpack.c.b16 %v439, %v437
      %v460 = vpack.c.b16 %v442, %v440
      %v461 = vpack.c.b16 %v443, %v441
      %v462 = vpack.c.b16 %v446, %v444
      %v463 = vpack.c.b16 %v447, %v445
      %v512 = vunpack.c.l.b16 %v356
      %v513 = vunpack.c.h.b16 %v356
      %v514 = vunpack.c.l.b16 %v357
      %v515 = vunpack.c.h.b16 %v357
      %v516 = vunpack.c.l.b16 %v358
      %v517 = vunpack.c.h.b16 %v358
      %v518 = vunpack.c.l.b16 %v359
      %v519 = vunpack.c.h.b16 %v359
      %v520 = vunpack.c.l.b16 %v360
      %v521 = vunpack.c.h.b16 %v360
      %v522 = vunpack.c.l.b16 %v361
      %v523 = vunpack.c.h.b16 %v361
      %v524 = vunpack.c.l.b16 %v362
      %v525 = vunpack.c.h.b16 %v362
      %v526 = vunpack.c.l.b16 %v363
      %v527 = vunpack.c.h.b16 %v363
      %v528 = vunpack.c.l.b16 %v364
      %v529 = vunpack.c.h.b16 %v364
      %v530 = vunpack.c.l.b16 %v365
      %v531 = vunpack.c.h.b16 %v365
      %v532 = vunpack.c.l.b16 %v366
      %v533 = vunpack.c.h.b16 %v366
      %v534 = vunpack.c.l.b16 %v367
      %v535 = vunpack.c.h.b16 %v367
      %v536 = vunpack.c.l.b16 %v368
      %v537 = vunpack.c.h.b16 %v368
      %v538 = vunpack.c.l.b16 %v369
      %v539 = vunpack.c.h.b16 %v369
      %v540 = vunpack.c.l.b16 %v370
      %v541 = vunpack.c.h.b16 %v370
      %v542 = vunpack.c.l.b16 %v371
      %v543 = vunpack.c.h.b16 %v371
      %v544 = vunpack.c.l.b16 %v372
      %v545 = vunpack.c.h.b16 %v372
      %v546 = vunpack.c.l.b16 %v373
      %v547 = vunpack.c.h.b16 %v373
      %v548 = vunpack.c.l.b16 %v374
      %v549 = vunpack.c.h.b16 %v374
      %v550 = vunpack.c.l.b16 %v375
      %v551 = vunpack.c.h.b16 %v375
      %v552 = vunpack.c.l.b16 %v376
      %v553 = vunpack.c.h.b16 %v376
      %v554 = vunpack.c.l.b16 %v377
      %v555 = vunpack.c.h.b16 %v377
      %v556 = vunpack.c.l.b16 %v378
      %v557 = vunpack.c.h.b16 %v378
      %v558 = vunpack.c.l.b16 %v379
      %v559 = vunpack.c.h.b16 %v379
      %v560 = vunpack.c.l.b16 %v380
      %v561 = vunpack.c.h.b16 %v380
      %v562 = vunpack.c.l.b16 %v381
      %v563 = vunpack.c.h.b16 %v381
      %v564 = vunpack.c.l.b16 %v382
      %v565 = vunpack.c.h.b16 %v382
      %v566 = vunpack.c.l.b16 %v383
      %v567 = vunpack.c.h.b16 %v383
      %v568 = vunpack.c.l.b16 %v384
      %v569 = vunpack.c.h.b16 %v384
      %v570 = vunpack.c.l.b16 %v385
      %v571 = vunpack.c.h.b16 %v385
      %v572 = vunpack.c.l.b16 %v386
      %v573 = vunpack.c.h.b16 %v386
      %v574 = vunpack.c.l.b16 %v387
      %v575 = vunpack.c.h.b16 %v387
      %v576 = vpack.c.b16 %v514, %v512
      %v577 = vpack.c.b16 %v515, %v513
      %v578 = vpack.c.b16 %v518, %v516
      %v579 = vpack.c.b16 %v519, %v517
      %v580 = vpack.c.b16 %v522, %v520
      %v581 = vpack.c.b16 %v523, %v521
      %v582 = vpack.c.b16 %v526, %v524
      %v583 = vpack.c.b16 %v527, %v525
      %v584 = vpack.c.b16 %v530, %v528
      %v585 = vpack.c.b16 %v531, %v529
      %v586 = vpack.c.b16 %v534, %v532
      %v587 = vpack.c.b16 %v535, %v533
      %v588 = vpack.c.b16 %v538, %v536
      %v589 = vpack.c.b16 %v539, %v537
      %v590 = vpack.c.b16 %v542, %v540
      %v591 = vpack.c.b16 %v543, %v541
      %v592 = vpack.c.b16 %v546, %v544
      %v593 = vpack.c.b16 %v547, %v545
      %v594 = vpack.c.b16 %v550, %v548
      %v595 = vpack.c.b16 %v551, %v549
      %v596 = vpack.c.b16 %v554, %v552
      %v597 = vpack.c.b16 %v555, %v553
      %v598 = vpack.c.b16 %v558, %v556
      %v599 = vpack.c.b16 %v559, %v557
      %v600 = vpack.c.b16 %v562, %v560
      %v601 = vpack.c.b16 %v563, %v561
      %v602 = vpack.c.b16 %v566, %v564
      %v603 = vpack.c.b16 %v567, %v565
      %v604 = vpack.c.b16 %v570, %v568
      %v605 = vpack.c.b16 %v571, %v569
      %v606 = vpack.c.b16 %v574, %v572
      %v607 = vpack.c.b16 %v575, %v573
      %640 = vmatprep.subr.bf16.mxu0 %v591
      %641 = vmatpush1.bf16.msra.mxu0 %v590
      %642 = vmatprep.subr.bf16.mxu0 %v589
      %643 = vmatpush1.bf16.msra.mxu0 %v588
      %644 = vmatprep.subr.bf16.mxu0 %v587
      %645 = vmatpush1.bf16.msra.mxu0 %v586
      %646 = vmatprep.subr.bf16.mxu0 %v585
      %647 = vmatpush1.bf16.msra.mxu0 %v584
      %648 = vmatprep.subr.bf16.mxu0 %v583
      %649 = vmatpush1.bf16.msra.mxu0 %v582
      %650 = vmatprep.subr.bf16.mxu0 %v581
      %651 = vmatpush1.bf16.msra.mxu0 %v580
      %652 = vmatprep.subr.bf16.mxu0 %v579
      %653 = vmatpush1.bf16.msra.mxu0 %v578
      %654 = vmatprep.subr.bf16.mxu0 %v577
      %655 = vmatpush1.bf16.msra.mxu0 %v576
      %656 = vmatprep.subr.bf16.mxu0 %v607
      %657 = vmatpush2.bf16.msra.mxu0 %v606
      %658 = vmatprep.subr.bf16.mxu0 %v605
      %659 = vmatpush2.bf16.msra.mxu0 %v604
      %660 = vmatprep.subr.bf16.mxu0 %v603
      %661 = vmatpush2.bf16.msra.mxu0 %v602
      %662 = vmatprep.subr.bf16.mxu0 %v601
      %663 = vmatpush2.bf16.msra.mxu0 %v600
      %664 = vmatprep.subr.bf16.mxu0 %v599
      %665 = vmatpush2.bf16.msra.mxu0 %v598
      %666 = vmatprep.subr.bf16.mxu0 %v597
      %667 = vmatpush2.bf16.msra.mxu0 %v596
      %668 = vmatprep.subr.bf16.mxu0 %v595
      %669 = vmatpush2.bf16.msra.mxu0 %v594
      %670 = vmatprep.subr.bf16.mxu0 %v593
      %671 = vmatpush2.bf16.msra.mxu0 %v592
      %672 = vmatprep.mubr.bf16.mxu0 %v449
      %673 = vmatmul.mubr.bf16.gmra.mxu0 %v448
      %v674 = vpop.f32.mrf.mxu0
      %v675 = vadd.f32 %v393, %v674
      %v676 = vpop.f32.mrf.mxu0
      %v677 = vadd.f32 %v397, %v676
      %v678 = vpop.f32.mrf.mxu0
      %v679 = vadd.f32 %v393, %v678
      %v680 = vpop.f32.mrf.mxu0
      %v681 = vadd.f32 %v397, %v680
      %682 = vmatprep.mubr.bf16.mxu0 %v451
      %683 = vmatmul.mubr.bf16.gmra.mxu0 %v450
      %v684 = vpop.f32.mrf.mxu0
      %v685 = vadd.f32 %v393, %v684
      %v686 = vpop.f32.mrf.mxu0
      %v687 = vadd.f32 %v397, %v686
      %v688 = vpop.f32.mrf.mxu0
      %v689 = vadd.f32 %v393, %v688
      %v690 = vpop.f32.mrf.mxu0
      %v691 = vadd.f32 %v397, %v690
      %692 = vmatprep.mubr.bf16.mxu0 %v453
      %693 = vmatmul.mubr.bf16.gmra.mxu0 %v452
      %v694 = vpop.f32.mrf.mxu0
      %v695 = vadd.f32 %v393, %v694
      %v696 = vpop.f32.mrf.mxu0
      %v697 = vadd.f32 %v397, %v696
      %v698 = vpop.f32.mrf.mxu0
      %v699 = vadd.f32 %v393, %v698
      %v700 = vpop.f32.mrf.mxu0
      %v701 = vadd.f32 %v397, %v700
      %702 = vmatprep.mubr.bf16.mxu0 %v455
      %703 = vmatmul.mubr.bf16.gmra.mxu0 %v454
      %v704 = vpop.f32.mrf.mxu0
      %v705 = vadd.f32 %v393, %v704
      %v706 = vpop.f32.mrf.mxu0
      %v707 = vadd.f32 %v397, %v706
      %v708 = vpop.f32.mrf.mxu0
      %v709 = vadd.f32 %v393, %v708
      %v710 = vpop.f32.mrf.mxu0
      %v711 = vadd.f32 %v397, %v710
      %712 = vmatprep.mubr.bf16.mxu0 %v457
      %713 = vmatmul.mubr.bf16.gmra.mxu0 %v456
      %v714 = vpop.f32.mrf.mxu0
      %v715 = vadd.f32 %v393, %v714
      %v716 = vpop.f32.mrf.mxu0
      %v717 = vadd.f32 %v397, %v716
      %v718 = vpop.f32.mrf.mxu0
      %v719 = vadd.f32 %v393, %v718
      %v720 = vpop.f32.mrf.mxu0
      %v721 = vadd.f32 %v397, %v720
      %722 = vmatprep.mubr.bf16.mxu0 %v459
      %723 = vmatmul.mubr.bf16.gmra.mxu0 %v458
      %v724 = vpop.f32.mrf.mxu0
      %v725 = vadd.f32 %v393, %v724
      %v726 = vpop.f32.mrf.mxu0
      %v727 = vadd.f32 %v397, %v726
      %v728 = vpop.f32.mrf.mxu0
      %v729 = vadd.f32 %v393, %v728
      %v730 = vpop.f32.mrf.mxu0
      %v731 = vadd.f32 %v397, %v730
      %732 = vmatprep.mubr.bf16.mxu0 %v461
      %733 = vmatmul.mubr.bf16.gmra.mxu0 %v460
      %v734 = vpop.f32.mrf.mxu0
      %v735 = vadd.f32 %v393, %v734
      %v736 = vpop.f32.mrf.mxu0
      %v737 = vadd.f32 %v397, %v736
      %v738 = vpop.f32.mrf.mxu0
      %v739 = vadd.f32 %v393, %v738
      %v740 = vpop.f32.mrf.mxu0
      %v741 = vadd.f32 %v397, %v740
      %742 = vmatprep.mubr.bf16.mxu0 %v463
      %743 = vmatmul.mubr.bf16.gmra.mxu0 %v462
      %v744 = vpop.f32.mrf.mxu0
      %v745 = vadd.f32 %v393, %v744
      %v746 = vpop.f32.mrf.mxu0
      %v747 = vadd.f32 %v397, %v746
      %v748 = vpop.f32.mrf.mxu0
      %v749 = vadd.f32 %v393, %v748
      %v750 = vpop.f32.mrf.mxu0
      %v751 = vadd.f32 %v397, %v750
      %752 = vdwg.mxu0
      %v753 = vmax.f32 %v675, 0.0
      %v754 = vmax.f32 %v677, 0.0
      %v755 = vmax.f32 %v679, 0.0
      %v756 = vmax.f32 %v681, 0.0
      %v757 = vmax.f32 %v685, 0.0
      %v758 = vmax.f32 %v687, 0.0
      %v759 = vmax.f32 %v689, 0.0
      %v760 = vmax.f32 %v691, 0.0
      %v761 = vmax.f32 %v695, 0.0
      %v762 = vmax.f32 %v697, 0.0
      %v763 = vmax.f32 %v699, 0.0
      %v764 = vmax.f32 %v701, 0.0
      %v765 = vmax.f32 %v705, 0.0
      %v766 = vmax.f32 %v707, 0.0
      %v767 = vmax.f32 %v709, 0.0
      %v768 = vmax.f32 %v711, 0.0
      %v769 = vmax.f32 %v715, 0.0
      %v770 = vmax.f32 %v717, 0.0
      %v771 = vmax.f32 %v719, 0.0
      %v772 = vmax.f32 %v721, 0.0
      %v773 = vmax.f32 %v725, 0.0
      %v774 = vmax.f32 %v727, 0.0
      %v775 = vmax.f32 %v729, 0.0
      %v776 = vmax.f32 %v731, 0.0
      %v777 = vmax.f32 %v735, 0.0
      %v778 = vmax.f32 %v737, 0.0
      %v779 = vmax.f32 %v739, 0.0
      %v780 = vmax.f32 %v741, 0.0
      %v781 = vmax.f32 %v745, 0.0
      %v782 = vmax.f32 %v747, 0.0
      %v783 = vmax.f32 %v749, 0.0
      %v784 = vmax.f32 %v751, 0.0
      %v785 = vpack.c.bf16 %v755, %v753
      %v786 = vpack.c.bf16 %v756, %v754
      %v787 = vpack.c.bf16 %v759, %v757
      %v788 = vpack.c.bf16 %v760, %v758
      %v789 = vpack.c.bf16 %v763, %v761
      %v790 = vpack.c.bf16 %v764, %v762
      %v791 = vpack.c.bf16 %v767, %v765
      %v792 = vpack.c.bf16 %v768, %v766
      %v793 = vpack.c.bf16 %v771, %v769
      %v794 = vpack.c.bf16 %v772, %v770
      %v795 = vpack.c.bf16 %v775, %v773
      %v796 = vpack.c.bf16 %v776, %v774
      %v797 = vpack.c.bf16 %v779, %v777
      %v798 = vpack.c.bf16 %v780, %v778
      %v799 = vpack.c.bf16 %v783, %v781
      %v800 = vpack.c.bf16 %v784, %v782
      %v801 = vld [vmem:[%s3] sm:$0xff]
      %v802 = vld [vmem:[%s3 + $0x8] sm:$0xff]
      %v803 = vld [vmem:[%s3 + $0x10] sm:$0xff]
      %v804 = vld [vmem:[%s3 + $0x18] sm:$0xff]
      %v805 = vld [vmem:[%s3 + $0x20] sm:$0xff]
      %v806 = vld [vmem:[%s3 + $0x28] sm:$0xff]
      %v807 = vld [vmem:[%s3 + $0x30] sm:$0xff]
      %v808 = vld [vmem:[%s3 + $0x38] sm:$0xff]
      %v809 = vld [vmem:[%s3 + $0x40] sm:$0xff]
      %v810 = vld [vmem:[%s3 + $0x48] sm:$0xff]
      %v811 = vld [vmem:[%s3 + $0x50] sm:$0xff]
      %v812 = vld [vmem:[%s3 + $0x58] sm:$0xff]
      %v813 = vld [vmem:[%s3 + $0x60] sm:$0xff]
      %v814 = vld [vmem:[%s3 + $0x68] sm:$0xff]
      %v815 = vld [vmem:[%s3 + $0x70] sm:$0xff]
      %v816 = vld [vmem:[%s3 + $0x78] sm:$0xff]
      %v817 = vld [vmem:[%s3 + $0x80] sm:$0xff]
      %v818 = vld [vmem:[%s3 + $0x88] sm:$0xff]
      %v819 = vld [vmem:[%s3 + $0x90] sm:$0xff]
      %v820 = vld [vmem:[%s3 + $0x98] sm:$0xff]
      %v821 = vld [vmem:[%s3 + $0xa0] sm:$0xff]
      %v822 = vld [vmem:[%s3 + $0xa8] sm:$0xff]
      %v823 = vld [vmem:[%s3 + $0xb0] sm:$0xff]
      %v824 = vld [vmem:[%s3 + $0xb8] sm:$0xff]
      %v825 = vld [vmem:[%s3 + $0xc0] sm:$0xff]
      %v826 = vld [vmem:[%s3 + $0xc8] sm:$0xff]
      %v827 = vld [vmem:[%s3 + $0xd0] sm:$0xff]
      %v828 = vld [vmem:[%s3 + $0xd8] sm:$0xff]
      %v829 = vld [vmem:[%s3 + $0xe0] sm:$0xff]
      %v830 = vld [vmem:[%s3 + $0xe8] sm:$0xff]
      %v831 = vld [vmem:[%s3 + $0xf0] sm:$0xff]
      %v832 = vld [vmem:[%s3 + $0xf8] sm:$0xff]
      %v833 = vld [vmem:[%s4] sm:$0x3]
      %v835 = vlaneseq
      %v836 = vshrl.u32 %v835, 7
      %v837 = vsub.s32 0, %v836
      %v838 = vrot.slane %v833, %v837
      %v839 = vlaneseq
      %v840 = vshrl.u32 %v839, 7
      %v841 = vsub.s32 1, %v840
      %v842 = vrot.slane %v833, %v841
      %v877 = vunpack.c.l.b16 %v801
      %v878 = vunpack.c.h.b16 %v801
      %v879 = vunpack.c.l.b16 %v802
      %v880 = vunpack.c.h.b16 %v802
      %v881 = vunpack.c.l.b16 %v803
      %v882 = vunpack.c.h.b16 %v803
      %v883 = vunpack.c.l.b16 %v804
      %v884 = vunpack.c.h.b16 %v804
      %v885 = vunpack.c.l.b16 %v805
      %v886 = vunpack.c.h.b16 %v805
      %v887 = vunpack.c.l.b16 %v806
      %v888 = vunpack.c.h.b16 %v806
      %v889 = vunpack.c.l.b16 %v807
      %v890 = vunpack.c.h.b16 %v807
      %v891 = vunpack.c.l.b16 %v808
      %v892 = vunpack.c.h.b16 %v808
      %v893 = vunpack.c.l.b16 %v809
      %v894 = vunpack.c.h.b16 %v809
      %v895 = vunpack.c.l.b16 %v810
      %v896 = vunpack.c.h.b16 %v810
      %v897 = vunpack.c.l.b16 %v811
      %v898 = vunpack.c.h.b16 %v811
      %v899 = vunpack.c.l.b16 %v812
      %v900 = vunpack.c.h.b16 %v812
      %v901 = vunpack.c.l.b16 %v813
      %v902 = vunpack.c.h.b16 %v813
      %v903 = vunpack.c.l.b16 %v814
      %v904 = vunpack.c.h.b16 %v814
      %v905 = vunpack.c.l.b16 %v815
      %v906 = vunpack.c.h.b16 %v815
      %v907 = vunpack.c.l.b16 %v816
      %v908 = vunpack.c.h.b16 %v816
      %v909 = vunpack.c.l.b16 %v817
      %v910 = vunpack.c.h.b16 %v817
      %v911 = vunpack.c.l.b16 %v818
      %v912 = vunpack.c.h.b16 %v818
      %v913 = vunpack.c.l.b16 %v819
      %v914 = vunpack.c.h.b16 %v819
      %v915 = vunpack.c.l.b16 %v820
      %v916 = vunpack.c.h.b16 %v820
      %v917 = vunpack.c.l.b16 %v821
      %v918 = vunpack.c.h.b16 %v821
      %v919 = vunpack.c.l.b16 %v822
      %v920 = vunpack.c.h.b16 %v822
      %v921 = vunpack.c.l.b16 %v823
      %v922 = vunpack.c.h.b16 %v823
      %v923 = vunpack.c.l.b16 %v824
      %v924 = vunpack.c.h.b16 %v824
      %v925 = vunpack.c.l.b16 %v825
      %v926 = vunpack.c.h.b16 %v825
      %v927 = vunpack.c.l.b16 %v826
      %v928 = vunpack.c.h.b16 %v826
      %v929 = vunpack.c.l.b16 %v827
      %v930 = vunpack.c.h.b16 %v827
      %v931 = vunpack.c.l.b16 %v828
      %v932 = vunpack.c.h.b16 %v828
      %v933 = vunpack.c.l.b16 %v829
      %v934 = vunpack.c.h.b16 %v829
      %v935 = vunpack.c.l.b16 %v830
      %v936 = vunpack.c.h.b16 %v830
      %v937 = vunpack.c.l.b16 %v831
      %v938 = vunpack.c.h.b16 %v831
      %v939 = vunpack.c.l.b16 %v832
      %v940 = vunpack.c.h.b16 %v832
      %v941 = vpack.c.b16 %v879, %v877
      %v942 = vpack.c.b16 %v880, %v878
      %v943 = vpack.c.b16 %v883, %v881
      %v944 = vpack.c.b16 %v884, %v882
      %v945 = vpack.c.b16 %v887, %v885
      %v946 = vpack.c.b16 %v888, %v886
      %v947 = vpack.c.b16 %v891, %v889
      %v948 = vpack.c.b16 %v892, %v890
      %v949 = vpack.c.b16 %v895, %v893
      %v950 = vpack.c.b16 %v896, %v894
      %v951 = vpack.c.b16 %v899, %v897
      %v952 = vpack.c.b16 %v900, %v898
      %v953 = vpack.c.b16 %v903, %v901
      %v954 = vpack.c.b16 %v904, %v902
      %v955 = vpack.c.b16 %v907, %v905
      %v956 = vpack.c.b16 %v908, %v906
      %v957 = vpack.c.b16 %v911, %v909
      %v958 = vpack.c.b16 %v912, %v910
      %v959 = vpack.c.b16 %v915, %v913
      %v960 = vpack.c.b16 %v916, %v914
      %v961 = vpack.c.b16 %v919, %v917
      %v962 = vpack.c.b16 %v920, %v918
      %v963 = vpack.c.b16 %v923, %v921
      %v964 = vpack.c.b16 %v924, %v922
      %v965 = vpack.c.b16 %v927, %v925
      %v966 = vpack.c.b16 %v928, %v926
      %v967 = vpack.c.b16 %v931, %v929
      %v968 = vpack.c.b16 %v932, %v930
      %v969 = vpack.c.b16 %v935, %v933
      %v970 = vpack.c.b16 %v936, %v934
      %v971 = vpack.c.b16 %v939, %v937
      %v972 = vpack.c.b16 %v940, %v938
      %1005 = vmatprep.subr.bf16.mxu0 %v956
      %1006 = vmatpush1.bf16.msra.mxu0 %v955
      %1007 = vmatprep.subr.bf16.mxu0 %v954
      %1008 = vmatpush1.bf16.msra.mxu0 %v953
      %1009 = vmatprep.subr.bf16.mxu0 %v952
      %1010 = vmatpush1.bf16.msra.mxu0 %v951
      %1011 = vmatprep.subr.bf16.mxu0 %v950
      %1012 = vmatpush1.bf16.msra.mxu0 %v949
      %1013 = vmatprep.subr.bf16.mxu0 %v948
      %1014 = vmatpush1.bf16.msra.mxu0 %v947
      %1015 = vmatprep.subr.bf16.mxu0 %v946
      %1016 = vmatpush1.bf16.msra.mxu0 %v945
      %1017 = vmatprep.subr.bf16.mxu0 %v944
      %1018 = vmatpush1.bf16.msra.mxu0 %v943
      %1019 = vmatprep.subr.bf16.mxu0 %v942
      %1020 = vmatpush1.bf16.msra.mxu0 %v941
      %1021 = vmatprep.subr.bf16.mxu0 %v972
      %1022 = vmatpush2.bf16.msra.mxu0 %v971
      %1023 = vmatprep.subr.bf16.mxu0 %v970
      %1024 = vmatpush2.bf16.msra.mxu0 %v969
      %1025 = vmatprep.subr.bf16.mxu0 %v968
      %1026 = vmatpush2.bf16.msra.mxu0 %v967
      %1027 = vmatprep.subr.bf16.mxu0 %v966
      %1028 = vmatpush2.bf16.msra.mxu0 %v965
      %1029 = vmatprep.subr.bf16.mxu0 %v964
      %1030 = vmatpush2.bf16.msra.mxu0 %v963
      %1031 = vmatprep.subr.bf16.mxu0 %v962
      %1032 = vmatpush2.bf16.msra.mxu0 %v961
      %1033 = vmatprep.subr.bf16.mxu0 %v960
      %1034 = vmatpush2.bf16.msra.mxu0 %v959
      %1035 = vmatprep.subr.bf16.mxu0 %v958
      %1036 = vmatpush2.bf16.msra.mxu0 %v957
      %1037 = vmatprep.mubr.bf16.mxu0 %v786
      %1038 = vmatmul.mubr.bf16.gmra.mxu0 %v785
      %v1039 = vpop.f32.mrf.mxu0
      %v1040 = vadd.f32 %v838, %v1039
      %v1041 = vpop.f32.mrf.mxu0
      %v1042 = vadd.f32 %v842, %v1041
      %v1043 = vpop.f32.mrf.mxu0
      %v1044 = vadd.f32 %v838, %v1043
      %v1045 = vpop.f32.mrf.mxu0
      %v1046 = vadd.f32 %v842, %v1045
      %1047 = vmatprep.mubr.bf16.mxu0 %v788
      %1048 = vmatmul.mubr.bf16.gmra.mxu0 %v787
      %v1049 = vpop.f32.mrf.mxu0
      %v1050 = vadd.f32 %v838, %v1049
      %v1051 = vpop.f32.mrf.mxu0
      %v1052 = vadd.f32 %v842, %v1051
      %v1053 = vpop.f32.mrf.mxu0
      %v1054 = vadd.f32 %v838, %v1053
      %v1055 = vpop.f32.mrf.mxu0
      %v1056 = vadd.f32 %v842, %v1055
      %1057 = vmatprep.mubr.bf16.mxu0 %v790
      %1058 = vmatmul.mubr.bf16.gmra.mxu0 %v789
      %v1059 = vpop.f32.mrf.mxu0
      %v1060 = vadd.f32 %v838, %v1059
      %v1061 = vpop.f32.mrf.mxu0
      %v1062 = vadd.f32 %v842, %v1061
      %v1063 = vpop.f32.mrf.mxu0
      %v1064 = vadd.f32 %v838, %v1063
      %v1065 = vpop.f32.mrf.mxu0
      %v1066 = vadd.f32 %v842, %v1065
      %1067 = vmatprep.mubr.bf16.mxu0 %v792
      %1068 = vmatmul.mubr.bf16.gmra.mxu0 %v791
      %v1069 = vpop.f32.mrf.mxu0
      %v1070 = vadd.f32 %v838, %v1069
      %v1071 = vpop.f32.mrf.mxu0
      %v1072 = vadd.f32 %v842, %v1071
      %v1073 = vpop.f32.mrf.mxu0
      %v1074 = vadd.f32 %v838, %v1073
      %v1075 = vpop.f32.mrf.mxu0
      %v1076 = vadd.f32 %v842, %v1075
      %1077 = vmatprep.mubr.bf16.mxu0 %v794
      %1078 = vmatmul.mubr.bf16.gmra.mxu0 %v793
      %v1079 = vpop.f32.mrf.mxu0
      %v1080 = vadd.f32 %v838, %v1079
      %v1081 = vpop.f32.mrf.mxu0
      %v1082 = vadd.f32 %v842, %v1081
      %v1083 = vpop.f32.mrf.mxu0
      %v1084 = vadd.f32 %v838, %v1083
      %v1085 = vpop.f32.mrf.mxu0
      %v1086 = vadd.f32 %v842, %v1085
      %1087 = vmatprep.mubr.bf16.mxu0 %v796
      %1088 = vmatmul.mubr.bf16.gmra.mxu0 %v795
      %v1089 = vpop.f32.mrf.mxu0
      %v1090 = vadd.f32 %v838, %v1089
      %v1091 = vpop.f32.mrf.mxu0
      %v1092 = vadd.f32 %v842, %v1091
      %v1093 = vpop.f32.mrf.mxu0
      %v1094 = vadd.f32 %v838, %v1093
      %v1095 = vpop.f32.mrf.mxu0
      %v1096 = vadd.f32 %v842, %v1095
      %1097 = vmatprep.mubr.bf16.mxu0 %v798
      %1098 = vmatmul.mubr.bf16.gmra.mxu0 %v797
      %v1099 = vpop.f32.mrf.mxu0
      %v1100 = vadd.f32 %v838, %v1099
      %v1101 = vpop.f32.mrf.mxu0
      %v1102 = vadd.f32 %v842, %v1101
      %v1103 = vpop.f32.mrf.mxu0
      %v1104 = vadd.f32 %v838, %v1103
      %v1105 = vpop.f32.mrf.mxu0
      %v1106 = vadd.f32 %v842, %v1105
      %1107 = vmatprep.mubr.bf16.mxu0 %v800
      %1108 = vmatmul.mubr.bf16.gmra.mxu0 %v799
      %v1109 = vpop.f32.mrf.mxu0
      %v1110 = vadd.f32 %v838, %v1109
      %v1111 = vpop.f32.mrf.mxu0
      %v1112 = vadd.f32 %v842, %v1111
      %v1113 = vpop.f32.mrf.mxu0
      %v1114 = vadd.f32 %v838, %v1113
      %v1115 = vpop.f32.mrf.mxu0
      %v1116 = vadd.f32 %v842, %v1115
      %1117 = vdwg.mxu0
      %v1118 = vmax.f32 %v1040, 0.0
      %v1119 = vmax.f32 %v1042, 0.0
      %v1120 = vmax.f32 %v1044, 0.0
      %v1121 = vmax.f32 %v1046, 0.0
      %v1122 = vmax.f32 %v1050, 0.0
      %v1123 = vmax.f32 %v1052, 0.0
      %v1124 = vmax.f32 %v1054, 0.0
      %v1125 = vmax.f32 %v1056, 0.0
      %v1126 = vmax.f32 %v1060, 0.0
      %v1127 = vmax.f32 %v1062, 0.0
      %v1128 = vmax.f32 %v1064, 0.0
      %v1129 = vmax.f32 %v1066, 0.0
      %v1130 = vmax.f32 %v1070, 0.0
      %v1131 = vmax.f32 %v1072, 0.0
      %v1132 = vmax.f32 %v1074, 0.0
      %v1133 = vmax.f32 %v1076, 0.0
      %v1134 = vmax.f32 %v1080, 0.0
      %v1135 = vmax.f32 %v1082, 0.0
      %v1136 = vmax.f32 %v1084, 0.0
      %v1137 = vmax.f32 %v1086, 0.0
      %v1138 = vmax.f32 %v1090, 0.0
      %v1139 = vmax.f32 %v1092, 0.0
      %v1140 = vmax.f32 %v1094, 0.0
      %v1141 = vmax.f32 %v1096, 0.0
      %v1142 = vmax.f32 %v1100, 0.0
      %v1143 = vmax.f32 %v1102, 0.0
      %v1144 = vmax.f32 %v1104, 0.0
      %v1145 = vmax.f32 %v1106, 0.0
      %v1146 = vmax.f32 %v1110, 0.0
      %v1147 = vmax.f32 %v1112, 0.0
      %v1148 = vmax.f32 %v1114, 0.0
      %v1149 = vmax.f32 %v1116, 0.0
      %v1150 = vpack.c.bf16 %v1120, %v1118
      %v1151 = vpack.c.bf16 %v1121, %v1119
      %v1152 = vpack.c.bf16 %v1124, %v1122
      %v1153 = vpack.c.bf16 %v1125, %v1123
      %v1154 = vpack.c.bf16 %v1128, %v1126
      %v1155 = vpack.c.bf16 %v1129, %v1127
      %v1156 = vpack.c.bf16 %v1132, %v1130
      %v1157 = vpack.c.bf16 %v1133, %v1131
      %v1158 = vpack.c.bf16 %v1136, %v1134
      %v1159 = vpack.c.bf16 %v1137, %v1135
      %v1160 = vpack.c.bf16 %v1140, %v1138
      %v1161 = vpack.c.bf16 %v1141, %v1139
      %v1162 = vpack.c.bf16 %v1144, %v1142
      %v1163 = vpack.c.bf16 %v1145, %v1143
      %v1164 = vpack.c.bf16 %v1148, %v1146
      %v1165 = vpack.c.bf16 %v1149, %v1147
      %v1166 = vld [vmem:[%s5] sm:$0xff]
      %v1167 = vld [vmem:[%s5 + $0x8] sm:$0xff]
      %v1168 = vld [vmem:[%s5 + $0x10] sm:$0xff]
      %v1169 = vld [vmem:[%s5 + $0x18] sm:$0xff]
      %v1170 = vld [vmem:[%s5 + $0x20] sm:$0xff]
      %v1171 = vld [vmem:[%s5 + $0x28] sm:$0xff]
      %v1172 = vld [vmem:[%s5 + $0x30] sm:$0xff]
      %v1173 = vld [vmem:[%s5 + $0x38] sm:$0xff]
      %v1174 = vld [vmem:[%s5 + $0x40] sm:$0xff]
      %v1175 = vld [vmem:[%s5 + $0x48] sm:$0xff]
      %v1176 = vld [vmem:[%s5 + $0x50] sm:$0xff]
      %v1177 = vld [vmem:[%s5 + $0x58] sm:$0xff]
      %v1178 = vld [vmem:[%s5 + $0x60] sm:$0xff]
      %v1179 = vld [vmem:[%s5 + $0x68] sm:$0xff]
      %v1180 = vld [vmem:[%s5 + $0x70] sm:$0xff]
      %v1181 = vld [vmem:[%s5 + $0x78] sm:$0xff]
      %v1182 = vld [vmem:[%s5 + $0x80] sm:$0xff]
      %v1183 = vld [vmem:[%s5 + $0x88] sm:$0xff]
      %v1184 = vld [vmem:[%s5 + $0x90] sm:$0xff]
      %v1185 = vld [vmem:[%s5 + $0x98] sm:$0xff]
      %v1186 = vld [vmem:[%s5 + $0xa0] sm:$0xff]
      %v1187 = vld [vmem:[%s5 + $0xa8] sm:$0xff]
      %v1188 = vld [vmem:[%s5 + $0xb0] sm:$0xff]
      %v1189 = vld [vmem:[%s5 + $0xb8] sm:$0xff]
      %v1190 = vld [vmem:[%s5 + $0xc0] sm:$0xff]
      %v1191 = vld [vmem:[%s5 + $0xc8] sm:$0xff]
      %v1192 = vld [vmem:[%s5 + $0xd0] sm:$0xff]
      %v1193 = vld [vmem:[%s5 + $0xd8] sm:$0xff]
      %v1194 = vld [vmem:[%s5 + $0xe0] sm:$0xff]
      %v1195 = vld [vmem:[%s5 + $0xe8] sm:$0xff]
      %v1196 = vld [vmem:[%s5 + $0xf0] sm:$0xff]
      %v1197 = vld [vmem:[%s5 + $0xf8] sm:$0xff]
      %v1198 = vld [vmem:[%s6] sm:$0x3]
      %v1200 = vlaneseq
      %v1201 = vshrl.u32 %v1200, 7
      %v1202 = vsub.s32 0, %v1201
      %v1203 = vrot.slane %v1198, %v1202
      %v1204 = vlaneseq
      %v1205 = vshrl.u32 %v1204, 7
      %v1206 = vsub.s32 1, %v1205
      %v1207 = vrot.slane %v1198, %v1206
      %v1242 = vunpack.c.l.b16 %v1166
      %v1243 = vunpack.c.h.b16 %v1166
      %v1244 = vunpack.c.l.b16 %v1167
      %v1245 = vunpack.c.h.b16 %v1167
      %v1246 = vunpack.c.l.b16 %v1168
      %v1247 = vunpack.c.h.b16 %v1168
      %v1248 = vunpack.c.l.b16 %v1169
      %v1249 = vunpack.c.h.b16 %v1169
      %v1250 = vunpack.c.l.b16 %v1170
      %v1251 = vunpack.c.h.b16 %v1170
      %v1252 = vunpack.c.l.b16 %v1171
      %v1253 = vunpack.c.h.b16 %v1171
      %v1254 = vunpack.c.l.b16 %v1172
      %v1255 = vunpack.c.h.b16 %v1172
      %v1256 = vunpack.c.l.b16 %v1173
      %v1257 = vunpack.c.h.b16 %v1173
      %v1258 = vunpack.c.l.b16 %v1174
      %v1259 = vunpack.c.h.b16 %v1174
      %v1260 = vunpack.c.l.b16 %v1175
      %v1261 = vunpack.c.h.b16 %v1175
      %v1262 = vunpack.c.l.b16 %v1176
      %v1263 = vunpack.c.h.b16 %v1176
      %v1264 = vunpack.c.l.b16 %v1177
      %v1265 = vunpack.c.h.b16 %v1177
      %v1266 = vunpack.c.l.b16 %v1178
      %v1267 = vunpack.c.h.b16 %v1178
      %v1268 = vunpack.c.l.b16 %v1179
      %v1269 = vunpack.c.h.b16 %v1179
      %v1270 = vunpack.c.l.b16 %v1180
      %v1271 = vunpack.c.h.b16 %v1180
      %v1272 = vunpack.c.l.b16 %v1181
      %v1273 = vunpack.c.h.b16 %v1181
      %v1274 = vunpack.c.l.b16 %v1182
      %v1275 = vunpack.c.h.b16 %v1182
      %v1276 = vunpack.c.l.b16 %v1183
      %v1277 = vunpack.c.h.b16 %v1183
      %v1278 = vunpack.c.l.b16 %v1184
      %v1279 = vunpack.c.h.b16 %v1184
      %v1280 = vunpack.c.l.b16 %v1185
      %v1281 = vunpack.c.h.b16 %v1185
      %v1282 = vunpack.c.l.b16 %v1186
      %v1283 = vunpack.c.h.b16 %v1186
      %v1284 = vunpack.c.l.b16 %v1187
      %v1285 = vunpack.c.h.b16 %v1187
      %v1286 = vunpack.c.l.b16 %v1188
      %v1287 = vunpack.c.h.b16 %v1188
      %v1288 = vunpack.c.l.b16 %v1189
      %v1289 = vunpack.c.h.b16 %v1189
      %v1290 = vunpack.c.l.b16 %v1190
      %v1291 = vunpack.c.h.b16 %v1190
      %v1292 = vunpack.c.l.b16 %v1191
      %v1293 = vunpack.c.h.b16 %v1191
      %v1294 = vunpack.c.l.b16 %v1192
      %v1295 = vunpack.c.h.b16 %v1192
      %v1296 = vunpack.c.l.b16 %v1193
      %v1297 = vunpack.c.h.b16 %v1193
      %v1298 = vunpack.c.l.b16 %v1194
      %v1299 = vunpack.c.h.b16 %v1194
      %v1300 = vunpack.c.l.b16 %v1195
      %v1301 = vunpack.c.h.b16 %v1195
      %v1302 = vunpack.c.l.b16 %v1196
      %v1303 = vunpack.c.h.b16 %v1196
      %v1304 = vunpack.c.l.b16 %v1197
      %v1305 = vunpack.c.h.b16 %v1197
      %v1306 = vpack.c.b16 %v1244, %v1242
      %v1307 = vpack.c.b16 %v1245, %v1243
      %v1308 = vpack.c.b16 %v1248, %v1246
      %v1309 = vpack.c.b16 %v1249, %v1247
      %v1310 = vpack.c.b16 %v1252, %v1250
      %v1311 = vpack.c.b16 %v1253, %v1251
      %v1312 = vpack.c.b16 %v1256, %v1254
      %v1313 = vpack.c.b16 %v1257, %v1255
      %v1314 = vpack.c.b16 %v1260, %v1258
      %v1315 = vpack.c.b16 %v1261, %v1259
      %v1316 = vpack.c.b16 %v1264, %v1262
      %v1317 = vpack.c.b16 %v1265, %v1263
      %v1318 = vpack.c.b16 %v1268, %v1266
      %v1319 = vpack.c.b16 %v1269, %v1267
      %v1320 = vpack.c.b16 %v1272, %v1270
      %v1321 = vpack.c.b16 %v1273, %v1271
      %v1322 = vpack.c.b16 %v1276, %v1274
      %v1323 = vpack.c.b16 %v1277, %v1275
      %v1324 = vpack.c.b16 %v1280, %v1278
      %v1325 = vpack.c.b16 %v1281, %v1279
      %v1326 = vpack.c.b16 %v1284, %v1282
      %v1327 = vpack.c.b16 %v1285, %v1283
      %v1328 = vpack.c.b16 %v1288, %v1286
      %v1329 = vpack.c.b16 %v1289, %v1287
      %v1330 = vpack.c.b16 %v1292, %v1290
      %v1331 = vpack.c.b16 %v1293, %v1291
      %v1332 = vpack.c.b16 %v1296, %v1294
      %v1333 = vpack.c.b16 %v1297, %v1295
      %v1334 = vpack.c.b16 %v1300, %v1298
      %v1335 = vpack.c.b16 %v1301, %v1299
      %v1336 = vpack.c.b16 %v1304, %v1302
      %v1337 = vpack.c.b16 %v1305, %v1303
      %1370 = vmatprep.subr.bf16.mxu0 %v1321
      %1371 = vmatpush1.bf16.msra.mxu0 %v1320
      %1372 = vmatprep.subr.bf16.mxu0 %v1319
      %1373 = vmatpush1.bf16.msra.mxu0 %v1318
      %1374 = vmatprep.subr.bf16.mxu0 %v1317
      %1375 = vmatpush1.bf16.msra.mxu0 %v1316
      %1376 = vmatprep.subr.bf16.mxu0 %v1315
      %1377 = vmatpush1.bf16.msra.mxu0 %v1314
      %1378 = vmatprep.subr.bf16.mxu0 %v1313
      %1379 = vmatpush1.bf16.msra.mxu0 %v1312
      %1380 = vmatprep.subr.bf16.mxu0 %v1311
      %1381 = vmatpush1.bf16.msra.mxu0 %v1310
      %1382 = vmatprep.subr.bf16.mxu0 %v1309
      %1383 = vmatpush1.bf16.msra.mxu0 %v1308
      %1384 = vmatprep.subr.bf16.mxu0 %v1307
      %1385 = vmatpush1.bf16.msra.mxu0 %v1306
      %1386 = vmatprep.subr.bf16.mxu0 %v1337
      %1387 = vmatpush2.bf16.msra.mxu0 %v1336
      %1388 = vmatprep.subr.bf16.mxu0 %v1335
      %1389 = vmatpush2.bf16.msra.mxu0 %v1334
      %1390 = vmatprep.subr.bf16.mxu0 %v1333
      %1391 = vmatpush2.bf16.msra.mxu0 %v1332
      %1392 = vmatprep.subr.bf16.mxu0 %v1331
      %1393 = vmatpush2.bf16.msra.mxu0 %v1330
      %1394 = vmatprep.subr.bf16.mxu0 %v1329
      %1395 = vmatpush2.bf16.msra.mxu0 %v1328
      %1396 = vmatprep.subr.bf16.mxu0 %v1327
      %1397 = vmatpush2.bf16.msra.mxu0 %v1326
      %1398 = vmatprep.subr.bf16.mxu0 %v1325
      %1399 = vmatpush2.bf16.msra.mxu0 %v1324
      %1400 = vmatprep.subr.bf16.mxu0 %v1323
      %1401 = vmatpush2.bf16.msra.mxu0 %v1322
      %1402 = vmatprep.mubr.bf16.mxu0 %v1151
      %1403 = vmatmul.mubr.bf16.gmra.mxu0 %v1150
      %v1404 = vpop.f32.mrf.mxu0
      %v1405 = vadd.f32 %v1203, %v1404
      %v1406 = vpop.f32.mrf.mxu0
      %v1407 = vadd.f32 %v1207, %v1406
      %v1408 = vpop.f32.mrf.mxu0
      %v1409 = vadd.f32 %v1203, %v1408
      %v1410 = vpop.f32.mrf.mxu0
      %v1411 = vadd.f32 %v1207, %v1410
      %1412 = vmatprep.mubr.bf16.mxu0 %v1153
      %1413 = vmatmul.mubr.bf16.gmra.mxu0 %v1152
      %v1414 = vpop.f32.mrf.mxu0
      %v1415 = vadd.f32 %v1203, %v1414
      %v1416 = vpop.f32.mrf.mxu0
      %v1417 = vadd.f32 %v1207, %v1416
      %v1418 = vpop.f32.mrf.mxu0
      %v1419 = vadd.f32 %v1203, %v1418
      %v1420 = vpop.f32.mrf.mxu0
      %v1421 = vadd.f32 %v1207, %v1420
      %1422 = vmatprep.mubr.bf16.mxu0 %v1155
      %1423 = vmatmul.mubr.bf16.gmra.mxu0 %v1154
      %v1424 = vpop.f32.mrf.mxu0
      %v1425 = vadd.f32 %v1203, %v1424
      %v1426 = vpop.f32.mrf.mxu0
      %v1427 = vadd.f32 %v1207, %v1426
      %v1428 = vpop.f32.mrf.mxu0
      %v1429 = vadd.f32 %v1203, %v1428
      %v1430 = vpop.f32.mrf.mxu0
      %v1431 = vadd.f32 %v1207, %v1430
      %1432 = vmatprep.mubr.bf16.mxu0 %v1157
      %1433 = vmatmul.mubr.bf16.gmra.mxu0 %v1156
      %v1434 = vpop.f32.mrf.mxu0
      %v1435 = vadd.f32 %v1203, %v1434
      %v1436 = vpop.f32.mrf.mxu0
      %v1437 = vadd.f32 %v1207, %v1436
      %v1438 = vpop.f32.mrf.mxu0
      %v1439 = vadd.f32 %v1203, %v1438
      %v1440 = vpop.f32.mrf.mxu0
      %v1441 = vadd.f32 %v1207, %v1440
      %1442 = vmatprep.mubr.bf16.mxu0 %v1159
      %1443 = vmatmul.mubr.bf16.gmra.mxu0 %v1158
      %v1444 = vpop.f32.mrf.mxu0
      %v1445 = vadd.f32 %v1203, %v1444
      %v1446 = vpop.f32.mrf.mxu0
      %v1447 = vadd.f32 %v1207, %v1446
      %v1448 = vpop.f32.mrf.mxu0
      %v1449 = vadd.f32 %v1203, %v1448
      %v1450 = vpop.f32.mrf.mxu0
      %v1451 = vadd.f32 %v1207, %v1450
      %1452 = vmatprep.mubr.bf16.mxu0 %v1161
      %1453 = vmatmul.mubr.bf16.gmra.mxu0 %v1160
      %v1454 = vpop.f32.mrf.mxu0
      %v1455 = vadd.f32 %v1203, %v1454
      %v1456 = vpop.f32.mrf.mxu0
      %v1457 = vadd.f32 %v1207, %v1456
      %v1458 = vpop.f32.mrf.mxu0
      %v1459 = vadd.f32 %v1203, %v1458
      %v1460 = vpop.f32.mrf.mxu0
      %v1461 = vadd.f32 %v1207, %v1460
      %1462 = vmatprep.mubr.bf16.mxu0 %v1163
      %1463 = vmatmul.mubr.bf16.gmra.mxu0 %v1162
      %v1464 = vpop.f32.mrf.mxu0
      %v1465 = vadd.f32 %v1203, %v1464
      %v1466 = vpop.f32.mrf.mxu0
      %v1467 = vadd.f32 %v1207, %v1466
      %v1468 = vpop.f32.mrf.mxu0
      %v1469 = vadd.f32 %v1203, %v1468
      %v1470 = vpop.f32.mrf.mxu0
      %v1471 = vadd.f32 %v1207, %v1470
      %1472 = vmatprep.mubr.bf16.mxu0 %v1165
      %1473 = vmatmul.mubr.bf16.gmra.mxu0 %v1164
      %v1474 = vpop.f32.mrf.mxu0
      %v1475 = vadd.f32 %v1203, %v1474
      %v1476 = vpop.f32.mrf.mxu0
      %v1477 = vadd.f32 %v1207, %v1476
      %v1478 = vpop.f32.mrf.mxu0
      %v1479 = vadd.f32 %v1203, %v1478
      %v1480 = vpop.f32.mrf.mxu0
      %v1481 = vadd.f32 %v1207, %v1480
      %1482 = vdwg.mxu0
      %v1483 = vmax.f32 %v1405, 0.0
      %v1484 = vmax.f32 %v1407, 0.0
      %v1485 = vmax.f32 %v1409, 0.0
      %v1486 = vmax.f32 %v1411, 0.0
      %v1487 = vmax.f32 %v1415, 0.0
      %v1488 = vmax.f32 %v1417, 0.0
      %v1489 = vmax.f32 %v1419, 0.0
      %v1490 = vmax.f32 %v1421, 0.0
      %v1491 = vmax.f32 %v1425, 0.0
      %v1492 = vmax.f32 %v1427, 0.0
      %v1493 = vmax.f32 %v1429, 0.0
      %v1494 = vmax.f32 %v1431, 0.0
      %v1495 = vmax.f32 %v1435, 0.0
      %v1496 = vmax.f32 %v1437, 0.0
      %v1497 = vmax.f32 %v1439, 0.0
      %v1498 = vmax.f32 %v1441, 0.0
      %v1499 = vmax.f32 %v1445, 0.0
      %v1500 = vmax.f32 %v1447, 0.0
      %v1501 = vmax.f32 %v1449, 0.0
      %v1502 = vmax.f32 %v1451, 0.0
      %v1503 = vmax.f32 %v1455, 0.0
      %v1504 = vmax.f32 %v1457, 0.0
      %v1505 = vmax.f32 %v1459, 0.0
      %v1506 = vmax.f32 %v1461, 0.0
      %v1507 = vmax.f32 %v1465, 0.0
      %v1508 = vmax.f32 %v1467, 0.0
      %v1509 = vmax.f32 %v1469, 0.0
      %v1510 = vmax.f32 %v1471, 0.0
      %v1511 = vmax.f32 %v1475, 0.0
      %v1512 = vmax.f32 %v1477, 0.0
      %v1513 = vmax.f32 %v1479, 0.0
      %v1514 = vmax.f32 %v1481, 0.0
      %v1515 = vpack.c.bf16 %v1485, %v1483
      %v1516 = vpack.c.bf16 %v1486, %v1484
      %v1517 = vpack.c.bf16 %v1489, %v1487
      %v1518 = vpack.c.bf16 %v1490, %v1488
      %v1519 = vpack.c.bf16 %v1493, %v1491
      %v1520 = vpack.c.bf16 %v1494, %v1492
      %v1521 = vpack.c.bf16 %v1497, %v1495
      %v1522 = vpack.c.bf16 %v1498, %v1496
      %v1523 = vpack.c.bf16 %v1501, %v1499
      %v1524 = vpack.c.bf16 %v1502, %v1500
      %v1525 = vpack.c.bf16 %v1505, %v1503
      %v1526 = vpack.c.bf16 %v1506, %v1504
      %v1527 = vpack.c.bf16 %v1509, %v1507
      %v1528 = vpack.c.bf16 %v1510, %v1508
      %v1529 = vpack.c.bf16 %v1513, %v1511
      %v1530 = vpack.c.bf16 %v1514, %v1512
      %v1531 = vld [vmem:[%s7] sm:$0xf]
      %v1532 = vld [vmem:[%s7 + $0x4] sm:$0xf]
      %v1533 = vld [vmem:[%s7 + $0x8] sm:$0xf]
      %v1534 = vld [vmem:[%s7 + $0xc] sm:$0xf]
      %v1535 = vld [vmem:[%s7 + $0x10] sm:$0xf]
      %v1536 = vld [vmem:[%s7 + $0x14] sm:$0xf]
      %v1537 = vld [vmem:[%s7 + $0x18] sm:$0xf]
      %v1538 = vld [vmem:[%s7 + $0x1c] sm:$0xf]
      %v1539 = vld [vmem:[%s7 + $0x20] sm:$0xf]
      %v1540 = vld [vmem:[%s7 + $0x24] sm:$0xf]
      %v1541 = vld [vmem:[%s7 + $0x28] sm:$0xf]
      %v1542 = vld [vmem:[%s7 + $0x2c] sm:$0xf]
      %v1543 = vld [vmem:[%s7 + $0x30] sm:$0xf]
      %v1544 = vld [vmem:[%s7 + $0x34] sm:$0xf]
      %v1545 = vld [vmem:[%s7 + $0x38] sm:$0xf]
      %v1546 = vld [vmem:[%s7 + $0x3c] sm:$0xf]
      %v1547 = vld [vmem:[%s7 + $0x40] sm:$0xf]
      %v1548 = vld [vmem:[%s7 + $0x44] sm:$0xf]
      %v1549 = vld [vmem:[%s7 + $0x48] sm:$0xf]
      %v1550 = vld [vmem:[%s7 + $0x4c] sm:$0xf]
      %v1551 = vld [vmem:[%s7 + $0x50] sm:$0xf]
      %v1552 = vld [vmem:[%s7 + $0x54] sm:$0xf]
      %v1553 = vld [vmem:[%s7 + $0x58] sm:$0xf]
      %v1554 = vld [vmem:[%s7 + $0x5c] sm:$0xf]
      %v1555 = vld [vmem:[%s7 + $0x60] sm:$0xf]
      %v1556 = vld [vmem:[%s7 + $0x64] sm:$0xf]
      %v1557 = vld [vmem:[%s7 + $0x68] sm:$0xf]
      %v1558 = vld [vmem:[%s7 + $0x6c] sm:$0xf]
      %v1559 = vld [vmem:[%s7 + $0x70] sm:$0xf]
      %v1560 = vld [vmem:[%s7 + $0x74] sm:$0xf]
      %v1561 = vld [vmem:[%s7 + $0x78] sm:$0xf]
      %v1562 = vld [vmem:[%s7 + $0x7c] sm:$0xf]
      %v1563 = vld [vmem:[%s8] sm:$0x1]
      %v1565 = vlaneseq
      %v1566 = vshrl.u32 %v1565, 7
      %v1567 = vsub.s32 0, %v1566
      %v1568 = vrot.slane %v1563, %v1567
      %v1602 = vunpack.c.l.b16 %v1531
      %v1603 = vunpack.c.l.b16 %v1532
      %v1604 = vunpack.c.l.b16 %v1533
      %v1605 = vunpack.c.l.b16 %v1534
      %v1606 = vunpack.c.l.b16 %v1535
      %v1607 = vunpack.c.l.b16 %v1536
      %v1608 = vunpack.c.l.b16 %v1537
      %v1609 = vunpack.c.l.b16 %v1538
      %v1610 = vunpack.c.l.b16 %v1539
      %v1611 = vunpack.c.l.b16 %v1540
      %v1612 = vunpack.c.l.b16 %v1541
      %v1613 = vunpack.c.l.b16 %v1542
      %v1614 = vunpack.c.l.b16 %v1543
      %v1615 = vunpack.c.l.b16 %v1544
      %v1616 = vunpack.c.l.b16 %v1545
      %v1617 = vunpack.c.l.b16 %v1546
      %v1618 = vunpack.c.l.b16 %v1547
      %v1619 = vunpack.c.l.b16 %v1548
      %v1620 = vunpack.c.l.b16 %v1549
      %v1621 = vunpack.c.l.b16 %v1550
      %v1622 = vunpack.c.l.b16 %v1551
      %v1623 = vunpack.c.l.b16 %v1552
      %v1624 = vunpack.c.l.b16 %v1553
      %v1625 = vunpack.c.l.b16 %v1554
      %v1626 = vunpack.c.l.b16 %v1555
      %v1627 = vunpack.c.l.b16 %v1556
      %v1628 = vunpack.c.l.b16 %v1557
      %v1629 = vunpack.c.l.b16 %v1558
      %v1630 = vunpack.c.l.b16 %v1559
      %v1631 = vunpack.c.l.b16 %v1560
      %v1632 = vunpack.c.l.b16 %v1561
      %v1633 = vunpack.c.l.b16 %v1562
      %v1634 = vpack.c.b16 %v1603, %v1602
      %v1635 = vpack.c.b16 %v1605, %v1604
      %v1636 = vpack.c.b16 %v1607, %v1606
      %v1637 = vpack.c.b16 %v1609, %v1608
      %v1638 = vpack.c.b16 %v1611, %v1610
      %v1639 = vpack.c.b16 %v1613, %v1612
      %v1640 = vpack.c.b16 %v1615, %v1614
      %v1641 = vpack.c.b16 %v1617, %v1616
      %v1642 = vpack.c.b16 %v1619, %v1618
      %v1643 = vpack.c.b16 %v1621, %v1620
      %v1644 = vpack.c.b16 %v1623, %v1622
      %v1645 = vpack.c.b16 %v1625, %v1624
      %v1646 = vpack.c.b16 %v1627, %v1626
      %v1647 = vpack.c.b16 %v1629, %v1628
      %v1648 = vpack.c.b16 %v1631, %v1630
      %v1649 = vpack.c.b16 %v1633, %v1632
      %1666 = vmatprep.subr.bf16.mxu0 0
      %1667 = vmatpush1.bf16.msra.mxu0 %v1641
      %1668 = vmatprep.subr.bf16.mxu0 0
      %1669 = vmatpush1.bf16.msra.mxu0 %v1640
      %1670 = vmatprep.subr.bf16.mxu0 0
      %1671 = vmatpush1.bf16.msra.mxu0 %v1639
      %1672 = vmatprep.subr.bf16.mxu0 0
      %1673 = vmatpush1.bf16.msra.mxu0 %v1638
      %1674 = vmatprep.subr.bf16.mxu0 0
      %1675 = vmatpush1.bf16.msra.mxu0 %v1637
      %1676 = vmatprep.subr.bf16.mxu0 0
      %1677 = vmatpush1.bf16.msra.mxu0 %v1636
      %1678 = vmatprep.subr.bf16.mxu0 0
      %1679 = vmatpush1.bf16.msra.mxu0 %v1635
      %1680 = vmatprep.subr.bf16.mxu0 0
      %1681 = vmatpush1.bf16.msra.mxu0 %v1634
      %1682 = vmatprep.subr.bf16.mxu0 0
      %1683 = vmatpush2.bf16.msra.mxu0 %v1649
      %1684 = vmatprep.subr.bf16.mxu0 0
      %1685 = vmatpush2.bf16.msra.mxu0 %v1648
      %1686 = vmatprep.subr.bf16.mxu0 0
      %1687 = vmatpush2.bf16.msra.mxu0 %v1647
      %1688 = vmatprep.subr.bf16.mxu0 0
      %1689 = vmatpush2.bf16.msra.mxu0 %v1646
      %1690 = vmatprep.subr.bf16.mxu0 0
      %1691 = vmatpush2.bf16.msra.mxu0 %v1645
      %1692 = vmatprep.subr.bf16.mxu0 0
      %1693 = vmatpush2.bf16.msra.mxu0 %v1644
      %1694 = vmatprep.subr.bf16.mxu0 0
      %1695 = vmatpush2.bf16.msra.mxu0 %v1643
      %1696 = vmatprep.subr.bf16.mxu0 0
      %1697 = vmatpush2.bf16.msra.mxu0 %v1642
      %1698 = vmatprep.mubr.bf16.mxu0 %v1516
      %1699 = vmatmul.mubr.bf16.gmra.mxu0 %v1515
      %v1700 = vpop.f32.mrf.mxu0
      %v1701 = vadd.f32 %v1568, %v1700
      %v1702 = vpop.f32.mrf.mxu0
      %v1703 = vpop.f32.mrf.mxu0
      %v1704 = vadd.f32 %v1568, %v1703
      %v1705 = vpop.f32.mrf.mxu0
      %1706 = vmatprep.mubr.bf16.mxu0 %v1518
      %1707 = vmatmul.mubr.bf16.gmra.mxu0 %v1517
      %v1708 = vpop.f32.mrf.mxu0
      %v1709 = vadd.f32 %v1568, %v1708
      %v1710 = vpop.f32.mrf.mxu0
      %v1711 = vpop.f32.mrf.mxu0
      %v1712 = vadd.f32 %v1568, %v1711
      %v1713 = vpop.f32.mrf.mxu0
      %1714 = vmatprep.mubr.bf16.mxu0 %v1520
      %1715 = vmatmul.mubr.bf16.gmra.mxu0 %v1519
      %v1716 = vpop.f32.mrf.mxu0
      %v1717 = vadd.f32 %v1568, %v1716
      %v1718 = vpop.f32.mrf.mxu0
      %v1719 = vpop.f32.mrf.mxu0
      %v1720 = vadd.f32 %v1568, %v1719
      %v1721 = vpop.f32.mrf.mxu0
      %1722 = vmatprep.mubr.bf16.mxu0 %v1522
      %1723 = vmatmul.mubr.bf16.gmra.mxu0 %v1521
      %v1724 = vpop.f32.mrf.mxu0
      %v1725 = vadd.f32 %v1568, %v1724
      %v1726 = vpop.f32.mrf.mxu0
      %v1727 = vpop.f32.mrf.mxu0
      %v1728 = vadd.f32 %v1568, %v1727
      %v1729 = vpop.f32.mrf.mxu0
      %1730 = vmatprep.mubr.bf16.mxu0 %v1524
      %1731 = vmatmul.mubr.bf16.gmra.mxu0 %v1523
      %v1732 = vpop.f32.mrf.mxu0
      %v1733 = vadd.f32 %v1568, %v1732
      %v1734 = vpop.f32.mrf.mxu0
      %v1735 = vpop.f32.mrf.mxu0
      %v1736 = vadd.f32 %v1568, %v1735
      %v1737 = vpop.f32.mrf.mxu0
      %1738 = vmatprep.mubr.bf16.mxu0 %v1526
      %1739 = vmatmul.mubr.bf16.gmra.mxu0 %v1525
      %v1740 = vpop.f32.mrf.mxu0
      %v1741 = vadd.f32 %v1568, %v1740
      %v1742 = vpop.f32.mrf.mxu0
      %v1743 = vpop.f32.mrf.mxu0
      %v1744 = vadd.f32 %v1568, %v1743
      %v1745 = vpop.f32.mrf.mxu0
      %1746 = vmatprep.mubr.bf16.mxu0 %v1528
      %1747 = vmatmul.mubr.bf16.gmra.mxu0 %v1527
      %v1748 = vpop.f32.mrf.mxu0
      %v1749 = vadd.f32 %v1568, %v1748
      %v1750 = vpop.f32.mrf.mxu0
      %v1751 = vpop.f32.mrf.mxu0
      %v1752 = vadd.f32 %v1568, %v1751
      %v1753 = vpop.f32.mrf.mxu0
      %1754 = vmatprep.mubr.bf16.mxu0 %v1530
      %1755 = vmatmul.mubr.bf16.gmra.mxu0 %v1529
      %v1756 = vpop.f32.mrf.mxu0
      %v1757 = vadd.f32 %v1568, %v1756
      %v1758 = vpop.f32.mrf.mxu0
      %v1759 = vpop.f32.mrf.mxu0
      %v1760 = vadd.f32 %v1568, %v1759
      %v1761 = vpop.f32.mrf.mxu0
      %1762 = vdwg.mxu0
      %1763 = vmax.xlane.f32.xlu0 %v1701
      %v1764 = vpop.xlane.xlu0 %1763
      %1765 = vmax.xlane.f32.xlu0 %v1704
      %v1766 = vpop.xlane.xlu0 %1765
      %1767 = vmax.xlane.f32.xlu0 %v1709
      %v1768 = vpop.xlane.xlu0 %1767
      %1769 = vmax.xlane.f32.xlu0 %v1712
      %v1770 = vpop.xlane.xlu0 %1769
      %1771 = vmax.xlane.f32.xlu0 %v1717
      %v1772 = vpop.xlane.xlu0 %1771
      %1773 = vmax.xlane.f32.xlu0 %v1720
      %v1774 = vpop.xlane.xlu0 %1773
      %1775 = vmax.xlane.f32.xlu0 %v1725
      %v1776 = vpop.xlane.xlu0 %1775
      %1777 = vmax.xlane.f32.xlu0 %v1728
      %v1778 = vpop.xlane.xlu0 %1777
      %1779 = vmax.xlane.f32.xlu0 %v1733
      %v1780 = vpop.xlane.xlu0 %1779
      %1781 = vmax.xlane.f32.xlu0 %v1736
      %v1782 = vpop.xlane.xlu0 %1781
      %1783 = vmax.xlane.f32.xlu0 %v1741
      %v1784 = vpop.xlane.xlu0 %1783
      %1785 = vmax.xlane.f32.xlu0 %v1744
      %v1786 = vpop.xlane.xlu0 %1785
      %1787 = vmax.xlane.f32.xlu0 %v1749
      %v1788 = vpop.xlane.xlu0 %1787
      %1789 = vmax.xlane.f32.xlu0 %v1752
      %v1790 = vpop.xlane.xlu0 %1789
      %1791 = vmax.xlane.f32.xlu0 %v1757
      %v1792 = vpop.xlane.xlu0 %1791
      %1793 = vmax.xlane.f32.xlu0 %v1760
      %v1794 = vpop.xlane.xlu0 %1793
      %v1795 = vsub.f32 %v1701, %v1764
      %v1796 = vsub.f32 %v1704, %v1766
      %v1797 = vsub.f32 %v1709, %v1768
      %v1798 = vsub.f32 %v1712, %v1770
      %v1799 = vsub.f32 %v1717, %v1772
      %v1800 = vsub.f32 %v1720, %v1774
      %v1801 = vsub.f32 %v1725, %v1776
      %v1802 = vsub.f32 %v1728, %v1778
      %v1803 = vsub.f32 %v1733, %v1780
      %v1804 = vsub.f32 %v1736, %v1782
      %v1805 = vsub.f32 %v1741, %v1784
      %v1806 = vsub.f32 %v1744, %v1786
      %v1807 = vsub.f32 %v1749, %v1788
      %v1808 = vsub.f32 %v1752, %v1790
      %v1809 = vsub.f32 %v1757, %v1792
      %v1810 = vsub.f32 %v1760, %v1794
      %v1811 = vmul.f32 %v1795, 1.442695
      %v1812 = vpow.pop %v1811
      %v1813 = vmul.f32 %v1796, 1.442695
      %v1814 = vpow.pop %v1813
      %v1815 = vmul.f32 %v1797, 1.442695
      %v1816 = vpow.pop %v1815
      %v1817 = vmul.f32 %v1798, 1.442695
      %v1818 = vpow.pop %v1817
      %v1819 = vmul.f32 %v1799, 1.442695
      %v1820 = vpow.pop %v1819
      %v1821 = vmul.f32 %v1800, 1.442695
      %v1822 = vpow.pop %v1821
      %v1823 = vmul.f32 %v1801, 1.442695
      %v1824 = vpow.pop %v1823
      %v1825 = vmul.f32 %v1802, 1.442695
      %v1826 = vpow.pop %v1825
      %v1827 = vmul.f32 %v1803, 1.442695
      %v1828 = vpow.pop %v1827
      %v1829 = vmul.f32 %v1804, 1.442695
      %v1830 = vpow.pop %v1829
      %v1831 = vmul.f32 %v1805, 1.442695
      %v1832 = vpow.pop %v1831
      %v1833 = vmul.f32 %v1806, 1.442695
      %v1834 = vpow.pop %v1833
      %v1835 = vmul.f32 %v1807, 1.442695
      %v1836 = vpow.pop %v1835
      %v1837 = vmul.f32 %v1808, 1.442695
      %v1838 = vpow.pop %v1837
      %v1839 = vmul.f32 %v1809, 1.442695
      %v1840 = vpow.pop %v1839
      %v1841 = vmul.f32 %v1810, 1.442695
      %v1842 = vpow.pop %v1841
      %1843 = vadd.xlane.f32.xlu0 %v1812
      %v1844 = vpop.xlane.xlu0 %1843
      %1845 = vadd.xlane.f32.xlu0 %v1814
      %v1846 = vpop.xlane.xlu0 %1845
      %1847 = vadd.xlane.f32.xlu0 %v1816
      %v1848 = vpop.xlane.xlu0 %1847
      %1849 = vadd.xlane.f32.xlu0 %v1818
      %v1850 = vpop.xlane.xlu0 %1849
      %1851 = vadd.xlane.f32.xlu0 %v1820
      %v1852 = vpop.xlane.xlu0 %1851
      %1853 = vadd.xlane.f32.xlu0 %v1822
      %v1854 = vpop.xlane.xlu0 %1853
      %1855 = vadd.xlane.f32.xlu0 %v1824
      %v1856 = vpop.xlane.xlu0 %1855
      %1857 = vadd.xlane.f32.xlu0 %v1826
      %v1858 = vpop.xlane.xlu0 %1857
      %1859 = vadd.xlane.f32.xlu0 %v1828
      %v1860 = vpop.xlane.xlu0 %1859
      %1861 = vadd.xlane.f32.xlu0 %v1830
      %v1862 = vpop.xlane.xlu0 %1861
      %1863 = vadd.xlane.f32.xlu0 %v1832
      %v1864 = vpop.xlane.xlu0 %1863
      %1865 = vadd.xlane.f32.xlu0 %v1834
      %v1866 = vpop.xlane.xlu0 %1865
      %1867 = vadd.xlane.f32.xlu0 %v1836
      %v1868 = vpop.xlane.xlu0 %1867
      %1869 = vadd.xlane.f32.xlu0 %v1838
      %v1870 = vpop.xlane.xlu0 %1869
      %1871 = vadd.xlane.f32.xlu0 %v1840
      %v1872 = vpop.xlane.xlu0 %1871
      %1873 = vadd.xlane.f32.xlu0 %v1842
      %v1874 = vpop.xlane.xlu0 %1873
      %v1875 = vrcp.pop %v1844
      %v1876 = vrcp.pop %v1846
      %v1877 = vrcp.pop %v1848
      %v1878 = vrcp.pop %v1850
      %v1879 = vrcp.pop %v1852
      %v1880 = vrcp.pop %v1854
      %v1881 = vrcp.pop %v1856
      %v1882 = vrcp.pop %v1858
      %v1883 = vrcp.pop %v1860
      %v1884 = vrcp.pop %v1862
      %v1885 = vrcp.pop %v1864
      %v1886 = vrcp.pop %v1866
      %v1887 = vrcp.pop %v1868
      %v1888 = vrcp.pop %v1870
      %v1889 = vrcp.pop %v1872
      %v1890 = vrcp.pop %v1874
      %v1891 = vmul.f32 %v1812, %v1875
      %v1892 = vmul.f32 %v1814, %v1876
      %v1893 = vmul.f32 %v1816, %v1877
      %v1894 = vmul.f32 %v1818, %v1878
      %v1895 = vmul.f32 %v1820, %v1879
      %v1896 = vmul.f32 %v1822, %v1880
      %v1897 = vmul.f32 %v1824, %v1881
      %v1898 = vmul.f32 %v1826, %v1882
      %v1899 = vmul.f32 %v1828, %v1883
      %v1900 = vmul.f32 %v1830, %v1884
      %v1901 = vmul.f32 %v1832, %v1885
      %v1902 = vmul.f32 %v1834, %v1886
      %v1903 = vmul.f32 %v1836, %v1887
      %v1904 = vmul.f32 %v1838, %v1888
      %v1905 = vmul.f32 %v1840, %v1889
      %v1906 = vmul.f32 %v1842, %v1890
      %1907 = vst [vmem:[%s337] sm:$0xff] %v1891
      %1908 = vst [vmem:[%s337 + $0x8] sm:$0xff] %v1892
      %1909 = vst [vmem:[%s337 + $0x10] sm:$0xff] %v1893
      %1910 = vst [vmem:[%s337 + $0x18] sm:$0xff] %v1894
      %1911 = vst [vmem:[%s337 + $0x20] sm:$0xff] %v1895
      %1912 = vst [vmem:[%s337 + $0x28] sm:$0xff] %v1896
      %1913 = vst [vmem:[%s337 + $0x30] sm:$0xff] %v1897
      %1914 = vst [vmem:[%s337 + $0x38] sm:$0xff] %v1898
      %1915 = vst [vmem:[%s337 + $0x40] sm:$0xff] %v1899
      %1916 = vst [vmem:[%s337 + $0x48] sm:$0xff] %v1900
      %1917 = vst [vmem:[%s337 + $0x50] sm:$0xff] %v1901
      %1918 = vst [vmem:[%s337 + $0x58] sm:$0xff] %v1902
      %1919 = vst [vmem:[%s337 + $0x60] sm:$0xff] %v1903
      %1920 = vst [vmem:[%s337 + $0x68] sm:$0xff] %v1904
      %1921 = vst [vmem:[%s337 + $0x70] sm:$0xff] %v1905
      %1922 = vst [vmem:[%s337 + $0x78] sm:$0xff] %v1906
      %s1923 = smul.u32 16, %s20
      %p1924 = scmp.lt.s32.totalorder %s1923, 31
      %s1925 = scalar_select %p1924, %s1923, 31
      %s1926 = smul.addr %s1925, 8
      %s1927 = scalar_lea.vmem %s9, %s1926
      // Predicated region
      $region57: #{policy_forward.1} parent=55 // pred_check
        %p1928 = pneg %p232
      $region58: #{policy_forward.1} parent=55 // pred_check_branch
        %1930 = sbr.rel (%p1928) target = $region60
      $region59: #{policy_forward.1} parent=55 // pred_region
        %s1931 = smul.u32 16, %s20
      $region60: #{policy_forward.1} parent=55 // pred_fallthru
        _
    $region56: #{policy_forward.1} parent=5 // pred_fallthru
      _
    %p1932 = scmp.le.s32.totalorder 2, %s15
    // Predicated region
    $region61: #{policy_forward.1} parent=5 // pred_check
      %p1933 = pneg %p1932
    $region62: #{policy_forward.1} parent=5 // pred_check_branch
      %1935 = sbr.rel (%p1933) target = $region64
    $region63: #{policy_forward.1} parent=5 // pred_region
      %s1936 = ssub.s32 %s15, 2
      // Predicated region
      $region65: #{policy_forward.1} parent=63 // pred_check
        %p1937 = pneg %p238
      $region66: #{policy_forward.1} parent=63 // pred_check_branch
        %1939 = sbr.rel (%p1937) target = $region68
      $region67: #{policy_forward.1} parent=63 // pred_region
        %s1940 = smul.u32 16, %s21
        %p1941 = scmp.lt.s32.totalorder %s1940, 31
        %s1942 = scalar_select %p1941, %s1940, 31
        %s1943 = smul.addr %s1942, 8
        %s1944 = scalar_lea.vmem %s9, %s1943
      $region68: #{policy_forward.1} parent=63 // pred_fallthru
        _
    $region64: #{policy_forward.1} parent=5 // pred_fallthru
      _
  $region6: #{policy_forward.1} parent=0 // loop_footer
    %s19 = sadd.s32 1, %s15
  $region7: #{policy_forward.1} parent=0 // loop_footer_branch
    %14 = sbr.rel target = $region3
  $region8: #{policy_forward.1} parent=0 // loop_exit
    _

</llo_original>
